<compile_context>
chip_gen: v5e
topology: v5e:2x2
jax: 0.10.0
libtpu: 0.0.40
codegen_flags: <defaults>
</compile_context>

<pallas_src>
import jax
import jax.numpy as jnp
from jax import lax
from jax.experimental import pallas as pl
from jax.experimental.pallas import tpu as pltpu


# --------------------------- fused forward (NCHW) ---------------------------

def depth_corr_forward(params, kernel_nchw, search_nchw):
    B, Cin, Hk_in, Wk_in = kernel_nchw.shape
    _, _, Hs, Ws = search_nchw.shape
    Hid = params["wk"].shape[0]
    Cout = params["w2"].shape[0]

    # 3x3 VALID conv output sizes
    Hkf, Wkf = Hk_in - 2, Wk_in - 2          # template features (depthwise "kernel")
    Hsf, Wsf = Hs - 2, Ws - 2                # search features
    ph, pw = Hkf // 2, Wkf // 2              # depthwise-corr padding
    Hp, Wp = Hsf + 2 * ph, Wsf + 2 * pw      # zero-padded search feature map
    Hc, Wc = Hp - Hkf + 1, Wp - Wkf + 1      # correlation map

    # Flat row-major layout (channels on sublanes, spatial on lanes).
    Wx = max(Wp, Wsf + pw + 2)               # flat row stride (== Wp for 5x5 templates)
    Mk = (Hkf - 1) * Wk_in + Wkf             # template feature flat span
    Mp = (Hp - 1) * Wx + Wp                  # padded search-feature flat span
    Mc = (Hc - 1) * Wx + Wc                  # correlation / head output flat span

    # Pre-pad the raw search input so the in-kernel flat conv directly produces the
    # padded search-feature plane at stride Wx; the mask restores the zero ring.
    max_read = (Mp - 1) + 2 * Wx + 2
    rows_x = -(-(max_read + 1) // Wx)
    pad_b = max(0, rows_x - ph - Hs)
    pad_r = max(0, Wx - pw - Ws)
    xs = jnp.pad(search_nchw.astype(jnp.float32),
                 ((0, 0), (0, 0), (ph, pad_b), (pw, pad_r)))[:, :, :rows_x, :Wx]
    xs = xs.reshape(B, Cin, rows_x * Wx)
    xk = kernel_nchw.astype(jnp.float32).reshape(B, Cin, Hk_in * Wk_in)

    rr = jnp.arange(Hp)
    cc = jnp.arange(Wx)
    mask2d = ((rr >= ph) & (rr < ph + Hsf))[:, None] & \
             ((cc >= pw) & (cc < pw + Wsf))[None, :]
    mask = mask2d.astype(jnp.float32).reshape(-1)[:Mp].reshape(1, Mp)

    def kernel(xk_ref, xs_ref, m_ref, wk_ref, ksh_ref, ws_ref, ssh_ref,
               w1_ref, hsh_ref, w2_ref, b2_ref, o_ref):
        xk_v = xk_ref[...]                       # (Cin, Hk_in*Wk_in)
        xs_v = xs_ref[...]                       # (Cin, rows_x*Wx)
        wk = wk_ref[...]                         # (Hid, 9*Cin)  (BN scale folded)
        ws = ws_ref[...]                         # (Hid, 9*Cin)  (BN scale folded)

        # ---- conv_kernel: 3x3 valid conv + folded BN + ReLU ----
        acc_k = jnp.zeros((Hid, Mk), jnp.float32)
        for kh in range(3):
            for kw in range(3):
                t = kh * 3 + kw
                s0 = kh * Wk_in + kw
                acc_k = acc_k + jnp.dot(wk[:, t * Cin:(t + 1) * Cin],
                                        xk_v[:, s0:s0 + Mk],
                                        preferred_element_type=jnp.float32)
        kf = jnp.maximum(acc_k + ksh_ref[...], 0.0)            # (Hid, Mk)

        # ---- conv_search over the pre-padded input -> padded feature plane ----
        acc_s = jnp.zeros((Hid, Mp), jnp.float32)
        for kh in range(3):
            for kw in range(3):
                t = kh * 3 + kw
                s0 = kh * Wx + kw
                acc_s = acc_s + jnp.dot(ws[:, t * Cin:(t + 1) * Cin],
                                        xs_v[:, s0:s0 + Mp],
                                        preferred_element_type=jnp.float32)
        sfp = jnp.maximum(acc_s + ssh_ref[...], 0.0) * m_ref[...]   # (Hid, Mp)

        # ---- depthwise correlation: Hkf*Wkf lane-shifted FMAs on (Hid, Mc) planes ----
        acc_c = jnp.zeros((Hid, Mc), jnp.float32)
        for u in range(Hkf):
            for v in range(Wkf):
                off = u * Wx + v
                r = u * Wk_in + v
                acc_c = acc_c + sfp[:, off:off + Mc] * kf[:, r:r + 1]

        # ---- head (pre-upsample): 1x1 conv(+folded BN)+ReLU, then 1x1 conv + bias ----
        h = jnp.maximum(jnp.dot(w1_ref[...], acc_c,
                                preferred_element_type=jnp.float32) + hsh_ref[...], 0.0)
        o_ref[...] = (jnp.dot(w2_ref[...], h, preferred_element_type=jnp.float32)
                      + b2_ref[...])

    def const2(shape):
        return pl.BlockSpec(shape, lambda b: (0, 0))

    out_flat = pl.pallas_call(
        kernel,
        out_shape=jax.ShapeDtypeStruct((B, Cout, Mc), jnp.float32),
        grid=(B,),
        in_specs=[
            pl.BlockSpec((None, Cin, Hk_in * Wk_in), lambda b: (b, 0, 0)),
            pl.BlockSpec((None, Cin, rows_x * Wx), lambda b: (b, 0, 0)),
            const2((1, Mp)),
            const2((Hid, 9 * Cin)), const2((Hid, 1)),
            const2((Hid, 9 * Cin)), const2((Hid, 1)),
            const2((Hid, Hid)), const2((Hid, 1)),
            const2((Cout, Hid)), const2((Cout, 1)),
        ],
        out_specs=pl.BlockSpec((None, Cout, Mc), lambda b: (b, 0, 0)),
        compiler_params=pltpu.CompilerParams(dimension_semantics=("parallel",)),
    )(xk, xs, mask,
      params["wk"], params["k_shift"], params["ws"], params["s_shift"],
      params["w1"], params["h_shift"], params["w2"], params["b2"])

    # F.interpolate(size=(Hs,Ws)) nearest == index gather; the head is 1x1 (pointwise),
    # so applying it before the gather is exact.  Channels-first layout => already NCHW.
    ri = (jnp.arange(Hs) * Hc) // Hs
    ci = (jnp.arange(Ws) * Wc) // Ws
    idx = ri[:, None] * Wx + ci[None, :]
    return out_flat[:, :, idx]                               # (B, Cout, Hs, Ws)


# --------------------------- deterministic params ---------------------------

def make_params(key, in_channels, hidden, out_channels):
    # TODO(synk): BatchNorm2d is modeled in eval mode with synthetic running stats
    # folded into scale/shift (training-mode batch-statistic updates not modeled).
    eps = 1e-5
    ks = list(jax.random.split(key, 20))

    def bn(kg, kb, km, kv, c):
        gamma = 1.0 + 0.1 * jax.random.normal(kg, (c,), jnp.float32)
        beta = 0.1 * jax.random.normal(kb, (c,), jnp.float32)
        mean = 0.1 * jax.random.normal(km, (c,), jnp.float32)
        var = 1.0 + 0.1 * jax.random.uniform(kv, (c,), jnp.float32)
        scale = gamma / jnp.sqrt(var + eps)
        shift = beta - mean * scale
        return (gamma, beta, mean, var), scale, shift

    wk_oihw = 0.1 * jax.random.normal(ks[0], (hidden, in_channels, 3, 3), jnp.float32)
    ws_oihw = 0.1 * jax.random.normal(ks[1], (hidden, in_channels, 3, 3), jnp.float32)
    w1_oihw = 0.1 * jax.random.normal(ks[2], (hidden, hidden, 1, 1), jnp.float32)
    w2_oihw = 0.1 * jax.random.normal(ks[3], (out_channels, hidden, 1, 1), jnp.float32)
    b2 = 0.1 * jax.random.normal(ks[4], (out_channels,), jnp.float32)

    bn_k, k_scale, k_shift = bn(ks[5], ks[6], ks[7], ks[8], hidden)
    bn_s, s_scale, s_shift = bn(ks[9], ks[10], ks[11], ks[12], hidden)
    bn_h, h_scale, h_shift = bn(ks[13], ks[14], ks[15], ks[16], hidden)

    # Channels-on-sublanes layout: conv weights as (Hid, 9*Cin), column = (kh*3+kw)*Cin+ci.
    # Inference BN scales are folded into the preceding conv / 1x1 weights.
    def conv_w(w_oihw, scale):
        w = jnp.transpose(w_oihw, (0, 2, 3, 1)).reshape(hidden, 9 * in_channels)
        return w * scale[:, None]

    params = {
        "wk": conv_w(wk_oihw, k_scale),
        "ws": conv_w(ws_oihw, s_scale),
        "k_shift": k_shift.reshape(hidden, 1),
        "s_shift": s_shift.reshape(hidden, 1),
        "w1": w1_oihw[:, :, 0, 0] * h_scale[:, None],
        "h_shift": h_shift.reshape(hidden, 1),
        "w2": w2_oihw[:, :, 0, 0],
        "b2": b2.reshape(out_channels, 1),
    }
    raw = {"wk": wk_oihw, "ws": ws_oihw, "w1": w1_oihw, "w2": w2_oihw, "b2": b2,
           "bn_k": bn_k, "bn_s": bn_s, "bn_h": bn_h}
    return params, raw


# --------------------------- pure-JAX reference ------------------------------

def reference_forward(raw, kernel_nchw, search_nchw):
    eps = 1e-5
    dn = ("NCHW", "OIHW", "NCHW")

    def conv_bn_relu(x, w, bn_p):
        gamma, beta, mean, var = bn_p
        y = lax.conv_general_dilated(x, w, (1, 1), "VALID", dimension_numbers=dn,
                                     precision=lax.Precision.HIGHEST)
        sc = (gamma / jnp.sqrt(var + eps))[None, :, None, None]
        y = (y - mean[None, :, None, None]) * sc + beta[None, :, None, None]
        return jnp.maximum(y, 0.0)

    kf = conv_bn_relu(kernel_nchw, raw["wk"], raw["bn_k"])
    sf = conv_bn_relu(search_nchw, raw["ws"], raw["bn_s"])
    B, C, Hk, Wk = kf.shape
    x = sf.reshape(1, B * C, sf.shape[2], sf.shape[3])
    k = kf.reshape(B * C, 1, Hk, Wk)
    corr = lax.conv_general_dilated(x, k, (1, 1),
                                    ((Hk // 2, Hk // 2), (Wk // 2, Wk // 2)),
                                    dimension_numbers=dn, feature_group_count=B * C,
                                    precision=lax.Precision.HIGHEST)
    corr = corr.reshape(B, C, corr.shape[2], corr.shape[3])
    Hs, Ws = search_nchw.shape[2], search_nchw.shape[3]
    ri = (jnp.arange(Hs) * corr.shape[2]) // Hs
    ci = (jnp.arange(Ws) * corr.shape[3]) // Ws
    up = corr[:, :, ri][:, :, :, ci]
    gamma, beta, mean, var = raw["bn_h"]
    h = lax.conv_general_dilated(up, raw["w1"], (1, 1), "VALID", dimension_numbers=dn,
                                 precision=lax.Precision.HIGHEST)
    sc = (gamma / jnp.sqrt(var + eps))[None, :, None, None]
    h = jnp.maximum((h - mean[None, :, None, None]) * sc + beta[None, :, None, None], 0.0)
    out = lax.conv_general_dilated(h, raw["w2"], (1, 1), "VALID", dimension_numbers=dn,
                                   precision=lax.Precision.HIGHEST)
    return out + raw["b2"][None, :, None, None]


# ------------------------------------ main -----------------------------------

if __name__ == "__main__":
    in_channels, hidden, out_channels = 4, 8, 4
    B = 2
    key = jax.random.PRNGKey(0)
    kp, kkern, ksrch = jax.random.split(key, 3)
    params, raw = make_params(kp, in_channels, hidden, out_channels)

    kernel_x = jax.random.normal(kkern, (B, in_channels, 7, 7), jnp.float32)    # template
    search_x = jax.random.normal(ksrch, (B, in_channels, 16, 16), jnp.float32)  # search

    fwd = jax.jit(depth_corr_forward)
    out = fwd(params, kernel_x, search_x)
    out = jax.block_until_ready(out)

    assert out.shape == (B, out_channels, 16, 16), out.shape
    ref = reference_forward(raw, kernel_x, search_x)
    err = float(jnp.max(jnp.abs(out - ref)))
    assert err < 1e-3, f"max abs error {err}"
    print("KERNEL_OK")
</pallas_src>

<mosaic_0001>
module attributes {stable_mosaic.version = 11 : i64} {
  func.func @kernel(%arg0: i32, %arg1: memref<1x4x49xf32, #tpu.memory_space<vmem>>, %arg2: memref<1x4x378xf32, #tpu.memory_space<vmem>>, %arg3: memref<1x324xf32, #tpu.memory_space<vmem>>, %arg4: memref<8x36xf32, #tpu.memory_space<vmem>>, %arg5: memref<8x1xf32, #tpu.memory_space<vmem>>, %arg6: memref<8x36xf32, #tpu.memory_space<vmem>>, %arg7: memref<8x1xf32, #tpu.memory_space<vmem>>, %arg8: memref<8x8xf32, #tpu.memory_space<vmem>>, %arg9: memref<8x1xf32, #tpu.memory_space<vmem>>, %arg10: memref<4x8xf32, #tpu.memory_space<vmem>>, %arg11: memref<4x1xf32, #tpu.memory_space<vmem>>, %arg12: memref<1x4x248xf32, #tpu.memory_space<vmem>>) attributes {dimension_semantics = [#tpu.dimension_semantics<parallel>], iteration_bounds = array<i64: 2>, scalar_prefetch = 0 : i64, scratch_operands = 0 : i64, tpu.core_type = #tpu.core_type<tc>, window_params = [{transform_indices = @transform_0, window_bounds = array<i64: 1, 4, 49>}, {transform_indices = @transform_1, window_bounds = array<i64: 1, 4, 378>}, {pipeline_mode = #tpu.pipeline_mode<synchronous>, transform_indices = @transform_2, window_bounds = array<i64: 1, 324>}, {pipeline_mode = #tpu.pipeline_mode<synchronous>, transform_indices = @transform_3, window_bounds = array<i64: 8, 36>}, {pipeline_mode = #tpu.pipeline_mode<synchronous>, transform_indices = @transform_4, window_bounds = array<i64: 8, 1>}, {pipeline_mode = #tpu.pipeline_mode<synchronous>, transform_indices = @transform_5, window_bounds = array<i64: 8, 36>}, {pipeline_mode = #tpu.pipeline_mode<synchronous>, transform_indices = @transform_6, window_bounds = array<i64: 8, 1>}, {pipeline_mode = #tpu.pipeline_mode<synchronous>, transform_indices = @transform_7, window_bounds = array<i64: 8, 8>}, {pipeline_mode = #tpu.pipeline_mode<synchronous>, transform_indices = @transform_8, window_bounds = array<i64: 8, 1>}, {pipeline_mode = #tpu.pipeline_mode<synchronous>, transform_indices = @transform_9, window_bounds = array<i64: 4, 8>}, {pipeline_mode = #tpu.pipeline_mode<synchronous>, transform_indices = @transform_10, window_bounds = array<i64: 4, 1>}, {transform_indices = @transform_11, window_bounds = array<i64: 1, 4, 248>}]} {
    %c0 = arith.constant 0 : index
    %c0_0 = arith.constant 0 : index
    %c0_1 = arith.constant 0 : index
    %0 = vector.load %arg1[%c0, %c0_0, %c0_1] : memref<1x4x49xf32, #tpu.memory_space<vmem>>, vector<1x4x49xf32>
    %1 = vector.shape_cast %0 : vector<1x4x49xf32> to vector<4x49xf32>
    %c0_2 = arith.constant 0 : index
    %c0_3 = arith.constant 0 : index
    %c0_4 = arith.constant 0 : index
    %2 = vector.load %arg2[%c0_2, %c0_3, %c0_4] : memref<1x4x378xf32, #tpu.memory_space<vmem>>, vector<1x4x378xf32>
    %3 = vector.shape_cast %2 : vector<1x4x378xf32> to vector<4x378xf32>
    %c0_5 = arith.constant 0 : index
    %c0_6 = arith.constant 0 : index
    %4 = vector.load %arg4[%c0_5, %c0_6] : memref<8x36xf32, #tpu.memory_space<vmem>>, vector<8x36xf32>
    %c0_7 = arith.constant 0 : index
    %c0_8 = arith.constant 0 : index
    %5 = vector.load %arg6[%c0_7, %c0_8] : memref<8x36xf32, #tpu.memory_space<vmem>>, vector<8x36xf32>
    %cst = arith.constant 0.000000e+00 : f32
    %6 = vector.broadcast %cst : f32 to vector<8x33xf32>
    %7 = vector.extract_strided_slice %4 {offsets = [0, 0], sizes = [8, 4], strides = [1, 1]} : vector<8x36xf32> to vector<8x4xf32>
    %8 = vector.extract_strided_slice %1 {offsets = [0, 0], sizes = [4, 33], strides = [1, 1]} : vector<4x49xf32> to vector<4x33xf32>
    %cst_9 = arith.constant dense<0.000000e+00> : vector<8x33xf32>
    %9 = tpu.matmul %7, %8, %cst_9 {dimension_numbers = #tpu.dot_dimension_numbers<[1], [0], [0], [1], [0, 0, 1, 1], [], []>} : vector<8x4xf32>, vector<4x33xf32>, vector<8x33xf32> -> vector<8x33xf32>
    %10 = arith.addf %6, %9 : vector<8x33xf32>
    %11 = vector.extract_strided_slice %4 {offsets = [0, 4], sizes = [8, 4], strides = [1, 1]} : vector<8x36xf32> to vector<8x4xf32>
    %12 = vector.extract_strided_slice %1 {offsets = [0, 1], sizes = [4, 33], strides = [1, 1]} : vector<4x49xf32> to vector<4x33xf32>
    %cst_10 = arith.constant dense<0.000000e+00> : vector<8x33xf32>
    %13 = tpu.matmul %11, %12, %cst_10 {dimension_numbers = #tpu.dot_dimension_numbers<[1], [0], [0], [1], [0, 0, 1, 1], [], []>} : vector<8x4xf32>, vector<4x33xf32>, vector<8x33xf32> -> vector<8x33xf32>
    %14 = arith.addf %10, %13 : vector<8x33xf32>
    %15 = vector.extract_strided_slice %4 {offsets = [0, 8], sizes = [8, 4], strides = [1, 1]} : vector<8x36xf32> to vector<8x4xf32>
    %16 = vector.extract_strided_slice %1 {offsets = [0, 2], sizes = [4, 33], strides = [1, 1]} : vector<4x49xf32> to vector<4x33xf32>
    %cst_11 = arith.constant dense<0.000000e+00> : vector<8x33xf32>
    %17 = tpu.matmul %15, %16, %cst_11 {dimension_numbers = #tpu.dot_dimension_numbers<[1], [0], [0], [1], [0, 0, 1, 1], [], []>} : vector<8x4xf32>, vector<4x33xf32>, vector<8x33xf32> -> vector<8x33xf32>
    %18 = arith.addf %14, %17 : vector<8x33xf32>
    %19 = vector.extract_strided_slice %4 {offsets = [0, 12], sizes = [8, 4], strides = [1, 1]} : vector<8x36xf32> to vector<8x4xf32>
    %20 = vector.extract_strided_slice %1 {offsets = [0, 7], sizes = [4, 33], strides = [1, 1]} : vector<4x49xf32> to vector<4x33xf32>
    %cst_12 = arith.constant dense<0.000000e+00> : vector<8x33xf32>
    %21 = tpu.matmul %19, %20, %cst_12 {dimension_numbers = #tpu.dot_dimension_numbers<[1], [0], [0], [1], [0, 0, 1, 1], [], []>} : vector<8x4xf32>, vector<4x33xf32>, vector<8x33xf32> -> vector<8x33xf32>
    %22 = arith.addf %18, %21 : vector<8x33xf32>
    %23 = vector.extract_strided_slice %4 {offsets = [0, 16], sizes = [8, 4], strides = [1, 1]} : vector<8x36xf32> to vector<8x4xf32>
    %24 = vector.extract_strided_slice %1 {offsets = [0, 8], sizes = [4, 33], strides = [1, 1]} : vector<4x49xf32> to vector<4x33xf32>
    %cst_13 = arith.constant dense<0.000000e+00> : vector<8x33xf32>
    %25 = tpu.matmul %23, %24, %cst_13 {dimension_numbers = #tpu.dot_dimension_numbers<[1], [0], [0], [1], [0, 0, 1, 1], [], []>} : vector<8x4xf32>, vector<4x33xf32>, vector<8x33xf32> -> vector<8x33xf32>
    %26 = arith.addf %22, %25 : vector<8x33xf32>
    %27 = vector.extract_strided_slice %4 {offsets = [0, 20], sizes = [8, 4], strides = [1, 1]} : vector<8x36xf32> to vector<8x4xf32>
    %28 = vector.extract_strided_slice %1 {offsets = [0, 9], sizes = [4, 33], strides = [1, 1]} : vector<4x49xf32> to vector<4x33xf32>
    %cst_14 = arith.constant dense<0.000000e+00> : vector<8x33xf32>
    %29 = tpu.matmul %27, %28, %cst_14 {dimension_numbers = #tpu.dot_dimension_numbers<[1], [0], [0], [1], [0, 0, 1, 1], [], []>} : vector<8x4xf32>, vector<4x33xf32>, vector<8x33xf32> -> vector<8x33xf32>
    %30 = arith.addf %26, %29 : vector<8x33xf32>
    %31 = vector.extract_strided_slice %4 {offsets = [0, 24], sizes = [8, 4], strides = [1, 1]} : vector<8x36xf32> to vector<8x4xf32>
    %32 = vector.extract_strided_slice %1 {offsets = [0, 14], sizes = [4, 33], strides = [1, 1]} : vector<4x49xf32> to vector<4x33xf32>
    %cst_15 = arith.constant dense<0.000000e+00> : vector<8x33xf32>
    %33 = tpu.matmul %31, %32, %cst_15 {dimension_numbers = #tpu.dot_dimension_numbers<[1], [0], [0], [1], [0, 0, 1, 1], [], []>} : vector<8x4xf32>, vector<4x33xf32>, vector<8x33xf32> -> vector<8x33xf32>
    %34 = arith.addf %30, %33 : vector<8x33xf32>
    %35 = vector.extract_strided_slice %4 {offsets = [0, 28], sizes = [8, 4], strides = [1, 1]} : vector<8x36xf32> to vector<8x4xf32>
    %36 = vector.extract_strided_slice %1 {offsets = [0, 15], sizes = [4, 33], strides = [1, 1]} : vector<4x49xf32> to vector<4x33xf32>
    %cst_16 = arith.constant dense<0.000000e+00> : vector<8x33xf32>
    %37 = tpu.matmul %35, %36, %cst_16 {dimension_numbers = #tpu.dot_dimension_numbers<[1], [0], [0], [1], [0, 0, 1, 1], [], []>} : vector<8x4xf32>, vector<4x33xf32>, vector<8x33xf32> -> vector<8x33xf32>
    %38 = arith.addf %34, %37 : vector<8x33xf32>
    %39 = vector.extract_strided_slice %4 {offsets = [0, 32], sizes = [8, 4], strides = [1, 1]} : vector<8x36xf32> to vector<8x4xf32>
    %40 = vector.extract_strided_slice %1 {offsets = [0, 16], sizes = [4, 33], strides = [1, 1]} : vector<4x49xf32> to vector<4x33xf32>
    %cst_17 = arith.constant dense<0.000000e+00> : vector<8x33xf32>
    %41 = tpu.matmul %39, %40, %cst_17 {dimension_numbers = #tpu.dot_dimension_numbers<[1], [0], [0], [1], [0, 0, 1, 1], [], []>} : vector<8x4xf32>, vector<4x33xf32>, vector<8x33xf32> -> vector<8x33xf32>
    %42 = arith.addf %38, %41 : vector<8x33xf32>
    %c0_18 = arith.constant 0 : index
    %c0_19 = arith.constant 0 : index
    %43 = vector.load %arg5[%c0_18, %c0_19] : memref<8x1xf32, #tpu.memory_space<vmem>>, vector<8x1xf32>
    %44 = vector.broadcast %43 : vector<8x1xf32> to vector<8x33xf32>
    %45 = arith.addf %42, %44 : vector<8x33xf32>
    %cst_20 = arith.constant 0.000000e+00 : f32
    %46 = vector.broadcast %cst_20 : f32 to vector<8x33xf32>
    %47 = arith.maximumf %45, %46 : vector<8x33xf32>
    %cst_21 = arith.constant 0.000000e+00 : f32
    %48 = vector.broadcast %cst_21 : f32 to vector<8x324xf32>
    %49 = vector.extract_strided_slice %5 {offsets = [0, 0], sizes = [8, 4], strides = [1, 1]} : vector<8x36xf32> to vector<8x4xf32>
    %50 = vector.extract_strided_slice %3 {offsets = [0, 0], sizes = [4, 324], strides = [1, 1]} : vector<4x378xf32> to vector<4x324xf32>
    %cst_22 = arith.constant dense<0.000000e+00> : vector<8x324xf32>
    %51 = tpu.matmul %49, %50, %cst_22 {dimension_numbers = #tpu.dot_dimension_numbers<[1], [0], [0], [1], [0, 0, 1, 1], [], []>} : vector<8x4xf32>, vector<4x324xf32>, vector<8x324xf32> -> vector<8x324xf32>
    %52 = arith.addf %48, %51 : vector<8x324xf32>
    %53 = vector.extract_strided_slice %5 {offsets = [0, 4], sizes = [8, 4], strides = [1, 1]} : vector<8x36xf32> to vector<8x4xf32>
    %54 = vector.extract_strided_slice %3 {offsets = [0, 1], sizes = [4, 324], strides = [1, 1]} : vector<4x378xf32> to vector<4x324xf32>
    %cst_23 = arith.constant dense<0.000000e+00> : vector<8x324xf32>
    %55 = tpu.matmul %53, %54, %cst_23 {dimension_numbers = #tpu.dot_dimension_numbers<[1], [0], [0], [1], [0, 0, 1, 1], [], []>} : vector<8x4xf32>, vector<4x324xf32>, vector<8x324xf32> -> vector<8x324xf32>
    %56 = arith.addf %52, %55 : vector<8x324xf32>
    %57 = vector.extract_strided_slice %5 {offsets = [0, 8], sizes = [8, 4], strides = [1, 1]} : vector<8x36xf32> to vector<8x4xf32>
    %58 = vector.extract_strided_slice %3 {offsets = [0, 2], sizes = [4, 324], strides = [1, 1]} : vector<4x378xf32> to vector<4x324xf32>
    %cst_24 = arith.constant dense<0.000000e+00> : vector<8x324xf32>
    %59 = tpu.matmul %57, %58, %cst_24 {dimension_numbers = #tpu.dot_dimension_numbers<[1], [0], [0], [1], [0, 0, 1, 1], [], []>} : vector<8x4xf32>, vector<4x324xf32>, vector<8x324xf32> -> vector<8x324xf32>
    %60 = arith.addf %56, %59 : vector<8x324xf32>
    %61 = vector.extract_strided_slice %5 {offsets = [0, 12], sizes = [8, 4], strides = [1, 1]} : vector<8x36xf32> to vector<8x4xf32>
    %62 = vector.extract_strided_slice %3 {offsets = [0, 18], sizes = [4, 324], strides = [1, 1]} : vector<4x378xf32> to vector<4x324xf32>
    %cst_25 = arith.constant dense<0.000000e+00> : vector<8x324xf32>
    %63 = tpu.matmul %61, %62, %cst_25 {dimension_numbers = #tpu.dot_dimension_numbers<[1], [0], [0], [1], [0, 0, 1, 1], [], []>} : vector<8x4xf32>, vector<4x324xf32>, vector<8x324xf32> -> vector<8x324xf32>
    %64 = arith.addf %60, %63 : vector<8x324xf32>
    %65 = vector.extract_strided_slice %5 {offsets = [0, 16], sizes = [8, 4], strides = [1, 1]} : vector<8x36xf32> to vector<8x4xf32>
    %66 = vector.extract_strided_slice %3 {offsets = [0, 19], sizes = [4, 324], strides = [1, 1]} : vector<4x378xf32> to vector<4x324xf32>
    %cst_26 = arith.constant dense<0.000000e+00> : vector<8x324xf32>
    %67 = tpu.matmul %65, %66, %cst_26 {dimension_numbers = #tpu.dot_dimension_numbers<[1], [0], [0], [1], [0, 0, 1, 1], [], []>} : vector<8x4xf32>, vector<4x324xf32>, vector<8x324xf32> -> vector<8x324xf32>
    %68 = arith.addf %64, %67 : vector<8x324xf32>
    %69 = vector.extract_strided_slice %5 {offsets = [0, 20], sizes = [8, 4], strides = [1, 1]} : vector<8x36xf32> to vector<8x4xf32>
    %70 = vector.extract_strided_slice %3 {offsets = [0, 20], sizes = [4, 324], strides = [1, 1]} : vector<4x378xf32> to vector<4x324xf32>
    %cst_27 = arith.constant dense<0.000000e+00> : vector<8x324xf32>
    %71 = tpu.matmul %69, %70, %cst_27 {dimension_numbers = #tpu.dot_dimension_numbers<[1], [0], [0], [1], [0, 0, 1, 1], [], []>} : vector<8x4xf32>, vector<4x324xf32>, vector<8x324xf32> -> vector<8x324xf32>
    %72 = arith.addf %68, %71 : vector<8x324xf32>
    %73 = vector.extract_strided_slice %5 {offsets = [0, 24], sizes = [8, 4], strides = [1, 1]} : vector<8x36xf32> to vector<8x4xf32>
    %74 = vector.extract_strided_slice %3 {offsets = [0, 36], sizes = [4, 324], strides = [1, 1]} : vector<4x378xf32> to vector<4x324xf32>
    %cst_28 = arith.constant dense<0.000000e+00> : vector<8x324xf32>
    %75 = tpu.matmul %73, %74, %cst_28 {dimension_numbers = #tpu.dot_dimension_numbers<[1], [0], [0], [1], [0, 0, 1, 1], [], []>} : vector<8x4xf32>, vector<4x324xf32>, vector<8x324xf32> -> vector<8x324xf32>
    %76 = arith.addf %72, %75 : vector<8x324xf32>
    %77 = vector.extract_strided_slice %5 {offsets = [0, 28], sizes = [8, 4], strides = [1, 1]} : vector<8x36xf32> to vector<8x4xf32>
    %78 = vector.extract_strided_slice %3 {offsets = [0, 37], sizes = [4, 324], strides = [1, 1]} : vector<4x378xf32> to vector<4x324xf32>
    %cst_29 = arith.constant dense<0.000000e+00> : vector<8x324xf32>
    %79 = tpu.matmul %77, %78, %cst_29 {dimension_numbers = #tpu.dot_dimension_numbers<[1], [0], [0], [1], [0, 0, 1, 1], [], []>} : vector<8x4xf32>, vector<4x324xf32>, vector<8x324xf32> -> vector<8x324xf32>
    %80 = arith.addf %76, %79 : vector<8x324xf32>
    %81 = vector.extract_strided_slice %5 {offsets = [0, 32], sizes = [8, 4], strides = [1, 1]} : vector<8x36xf32> to vector<8x4xf32>
    %82 = vector.extract_strided_slice %3 {offsets = [0, 38], sizes = [4, 324], strides = [1, 1]} : vector<4x378xf32> to vector<4x324xf32>
    %cst_30 = arith.constant dense<0.000000e+00> : vector<8x324xf32>
    %83 = tpu.matmul %81, %82, %cst_30 {dimension_numbers = #tpu.dot_dimension_numbers<[1], [0], [0], [1], [0, 0, 1, 1], [], []>} : vector<8x4xf32>, vector<4x324xf32>, vector<8x324xf32> -> vector<8x324xf32>
    %84 = arith.addf %80, %83 : vector<8x324xf32>
    %c0_31 = arith.constant 0 : index
    %c0_32 = arith.constant 0 : index
    %85 = vector.load %arg7[%c0_31, %c0_32] : memref<8x1xf32, #tpu.memory_space<vmem>>, vector<8x1xf32>
    %86 = vector.broadcast %85 : vector<8x1xf32> to vector<8x324xf32>
    %87 = arith.addf %84, %86 : vector<8x324xf32>
    %cst_33 = arith.constant 0.000000e+00 : f32
    %88 = vector.broadcast %cst_33 : f32 to vector<8x324xf32>
    %89 = arith.maximumf %87, %88 : vector<8x324xf32>
    %c0_34 = arith.constant 0 : index
    %c0_35 = arith.constant 0 : index
    %90 = vector.load %arg3[%c0_34, %c0_35] : memref<1x324xf32, #tpu.memory_space<vmem>>, vector<1x324xf32>
    %91 = vector.broadcast %90 : vector<1x324xf32> to vector<8x324xf32>
    %92 = arith.mulf %89, %91 : vector<8x324xf32>
    %cst_36 = arith.constant 0.000000e+00 : f32
    %93 = vector.broadcast %cst_36 : f32 to vector<8x248xf32>
    %94 = vector.extract_strided_slice %92 {offsets = [0, 0], sizes = [8, 248], strides = [1, 1]} : vector<8x324xf32> to vector<8x248xf32>
    %95 = vector.extract_strided_slice %47 {offsets = [0, 0], sizes = [8, 1], strides = [1, 1]} : vector<8x33xf32> to vector<8x1xf32>
    %96 = vector.broadcast %95 : vector<8x1xf32> to vector<8x248xf32>
    %97 = arith.mulf %94, %96 : vector<8x248xf32>
    %98 = arith.addf %93, %97 : vector<8x248xf32>
    %99 = vector.extract_strided_slice %92 {offsets = [0, 1], sizes = [8, 248], strides = [1, 1]} : vector<8x324xf32> to vector<8x248xf32>
    %100 = vector.extract_strided_slice %47 {offsets = [0, 1], sizes = [8, 1], strides = [1, 1]} : vector<8x33xf32> to vector<8x1xf32>
    %101 = vector.broadcast %100 : vector<8x1xf32> to vector<8x248xf32>
    %102 = arith.mulf %99, %101 : vector<8x248xf32>
    %103 = arith.addf %98, %102 : vector<8x248xf32>
    %104 = vector.extract_strided_slice %92 {offsets = [0, 2], sizes = [8, 248], strides = [1, 1]} : vector<8x324xf32> to vector<8x248xf32>
    %105 = vector.extract_strided_slice %47 {offsets = [0, 2], sizes = [8, 1], strides = [1, 1]} : vector<8x33xf32> to vector<8x1xf32>
    %106 = vector.broadcast %105 : vector<8x1xf32> to vector<8x248xf32>
    %107 = arith.mulf %104, %106 : vector<8x248xf32>
    %108 = arith.addf %103, %107 : vector<8x248xf32>
    %109 = vector.extract_strided_slice %92 {offsets = [0, 3], sizes = [8, 248], strides = [1, 1]} : vector<8x324xf32> to vector<8x248xf32>
    %110 = vector.extract_strided_slice %47 {offsets = [0, 3], sizes = [8, 1], strides = [1, 1]} : vector<8x33xf32> to vector<8x1xf32>
    %111 = vector.broadcast %110 : vector<8x1xf32> to vector<8x248xf32>
    %112 = arith.mulf %109, %111 : vector<8x248xf32>
    %113 = arith.addf %108, %112 : vector<8x248xf32>
    %114 = vector.extract_strided_slice %92 {offsets = [0, 4], sizes = [8, 248], strides = [1, 1]} : vector<8x324xf32> to vector<8x248xf32>
    %115 = vector.extract_strided_slice %47 {offsets = [0, 4], sizes = [8, 1], strides = [1, 1]} : vector<8x33xf32> to vector<8x1xf32>
    %116 = vector.broadcast %115 : vector<8x1xf32> to vector<8x248xf32>
    %117 = arith.mulf %114, %116 : vector<8x248xf32>
    %118 = arith.addf %113, %117 : vector<8x248xf32>
    %119 = vector.extract_strided_slice %92 {offsets = [0, 18], sizes = [8, 248], strides = [1, 1]} : vector<8x324xf32> to vector<8x248xf32>
    %120 = vector.extract_strided_slice %47 {offsets = [0, 7], sizes = [8, 1], strides = [1, 1]} : vector<8x33xf32> to vector<8x1xf32>
    %121 = vector.broadcast %120 : vector<8x1xf32> to vector<8x248xf32>
    %122 = arith.mulf %119, %121 : vector<8x248xf32>
    %123 = arith.addf %118, %122 : vector<8x248xf32>
    %124 = vector.extract_strided_slice %92 {offsets = [0, 19], sizes = [8, 248], strides = [1, 1]} : vector<8x324xf32> to vector<8x248xf32>
    %125 = vector.extract_strided_slice %47 {offsets = [0, 8], sizes = [8, 1], strides = [1, 1]} : vector<8x33xf32> to vector<8x1xf32>
    %126 = vector.broadcast %125 : vector<8x1xf32> to vector<8x248xf32>
    %127 = arith.mulf %124, %126 : vector<8x248xf32>
    %128 = arith.addf %123, %127 : vector<8x248xf32>
    %129 = vector.extract_strided_slice %92 {offsets = [0, 20], sizes = [8, 248], strides = [1, 1]} : vector<8x324xf32> to vector<8x248xf32>
    %130 = vector.extract_strided_slice %47 {offsets = [0, 9], sizes = [8, 1], strides = [1, 1]} : vector<8x33xf32> to vector<8x1xf32>
    %131 = vector.broadcast %130 : vector<8x1xf32> to vector<8x248xf32>
    %132 = arith.mulf %129, %131 : vector<8x248xf32>
    %133 = arith.addf %128, %132 : vector<8x248xf32>
    %134 = vector.extract_strided_slice %92 {offsets = [0, 21], sizes = [8, 248], strides = [1, 1]} : vector<8x324xf32> to vector<8x248xf32>
    %135 = vector.extract_strided_slice %47 {offsets = [0, 10], sizes = [8, 1], strides = [1, 1]} : vector<8x33xf32> to vector<8x1xf32>
    %136 = vector.broadcast %135 : vector<8x1xf32> to vector<8x248xf32>
    %137 = arith.mulf %134, %136 : vector<8x248xf32>
    %138 = arith.addf %133, %137 : vector<8x248xf32>
    %139 = vector.extract_strided_slice %92 {offsets = [0, 22], sizes = [8, 248], strides = [1, 1]} : vector<8x324xf32> to vector<8x248xf32>
    %140 = vector.extract_strided_slice %47 {offsets = [0, 11], sizes = [8, 1], strides = [1, 1]} : vector<8x33xf32> to vector<8x1xf32>
    %141 = vector.broadcast %140 : vector<8x1xf32> to vector<8x248xf32>
    %142 = arith.mulf %139, %141 : vector<8x248xf32>
    %143 = arith.addf %138, %142 : vector<8x248xf32>
    %144 = vector.extract_strided_slice %92 {offsets = [0, 36], sizes = [8, 248], strides = [1, 1]} : vector<8x324xf32> to vector<8x248xf32>
    %145 = vector.extract_strided_slice %47 {offsets = [0, 14], sizes = [8, 1], strides = [1, 1]} : vector<8x33xf32> to vector<8x1xf32>
    %146 = vector.broadcast %145 : vector<8x1xf32> to vector<8x248xf32>
    %147 = arith.mulf %144, %146 : vector<8x248xf32>
    %148 = arith.addf %143, %147 : vector<8x248xf32>
    %149 = vector.extract_strided_slice %92 {offsets = [0, 37], sizes = [8, 248], strides = [1, 1]} : vector<8x324xf32> to vector<8x248xf32>
    %150 = vector.extract_strided_slice %47 {offsets = [0, 15], sizes = [8, 1], strides = [1, 1]} : vector<8x33xf32> to vector<8x1xf32>
    %151 = vector.broadcast %150 : vector<8x1xf32> to vector<8x248xf32>
    %152 = arith.mulf %149, %151 : vector<8x248xf32>
    %153 = arith.addf %148, %152 : vector<8x248xf32>
    %154 = vector.extract_strided_slice %92 {offsets = [0, 38], sizes = [8, 248], strides = [1, 1]} : vector<8x324xf32> to vector<8x248xf32>
    %155 = vector.extract_strided_slice %47 {offsets = [0, 16], sizes = [8, 1], strides = [1, 1]} : vector<8x33xf32> to vector<8x1xf32>
    %156 = vector.broadcast %155 : vector<8x1xf32> to vector<8x248xf32>
    %157 = arith.mulf %154, %156 : vector<8x248xf32>
    %158 = arith.addf %153, %157 : vector<8x248xf32>
    %159 = vector.extract_strided_slice %92 {offsets = [0, 39], sizes = [8, 248], strides = [1, 1]} : vector<8x324xf32> to vector<8x248xf32>
    %160 = vector.extract_strided_slice %47 {offsets = [0, 17], sizes = [8, 1], strides = [1, 1]} : vector<8x33xf32> to vector<8x1xf32>
    %161 = vector.broadcast %160 : vector<8x1xf32> to vector<8x248xf32>
    %162 = arith.mulf %159, %161 : vector<8x248xf32>
    %163 = arith.addf %158, %162 : vector<8x248xf32>
    %164 = vector.extract_strided_slice %92 {offsets = [0, 40], sizes = [8, 248], strides = [1, 1]} : vector<8x324xf32> to vector<8x248xf32>
    %165 = vector.extract_strided_slice %47 {offsets = [0, 18], sizes = [8, 1], strides = [1, 1]} : vector<8x33xf32> to vector<8x1xf32>
    %166 = vector.broadcast %165 : vector<8x1xf32> to vector<8x248xf32>
    %167 = arith.mulf %164, %166 : vector<8x248xf32>
    %168 = arith.addf %163, %167 : vector<8x248xf32>
    %169 = vector.extract_strided_slice %92 {offsets = [0, 54], sizes = [8, 248], strides = [1, 1]} : vector<8x324xf32> to vector<8x248xf32>
    %170 = vector.extract_strided_slice %47 {offsets = [0, 21], sizes = [8, 1], strides = [1, 1]} : vector<8x33xf32> to vector<8x1xf32>
    %171 = vector.broadcast %170 : vector<8x1xf32> to vector<8x248xf32>
    %172 = arith.mulf %169, %171 : vector<8x248xf32>
    %173 = arith.addf %168, %172 : vector<8x248xf32>
    %174 = vector.extract_strided_slice %92 {offsets = [0, 55], sizes = [8, 248], strides = [1, 1]} : vector<8x324xf32> to vector<8x248xf32>
    %175 = vector.extract_strided_slice %47 {offsets = [0, 22], sizes = [8, 1], strides = [1, 1]} : vector<8x33xf32> to vector<8x1xf32>
    %176 = vector.broadcast %175 : vector<8x1xf32> to vector<8x248xf32>
    %177 = arith.mulf %174, %176 : vector<8x248xf32>
    %178 = arith.addf %173, %177 : vector<8x248xf32>
    %179 = vector.extract_strided_slice %92 {offsets = [0, 56], sizes = [8, 248], strides = [1, 1]} : vector<8x324xf32> to vector<8x248xf32>
    %180 = vector.extract_strided_slice %47 {offsets = [0, 23], sizes = [8, 1], strides = [1, 1]} : vector<8x33xf32> to vector<8x1xf32>
    %181 = vector.broadcast %180 : vector<8x1xf32> to vector<8x248xf32>
    %182 = arith.mulf %179, %181 : vector<8x248xf32>
    %183 = arith.addf %178, %182 : vector<8x248xf32>
    %184 = vector.extract_strided_slice %92 {offsets = [0, 57], sizes = [8, 248], strides = [1, 1]} : vector<8x324xf32> to vector<8x248xf32>
    %185 = vector.extract_strided_slice %47 {offsets = [0, 24], sizes = [8, 1], strides = [1, 1]} : vector<8x33xf32> to vector<8x1xf32>
    %186 = vector.broadcast %185 : vector<8x1xf32> to vector<8x248xf32>
    %187 = arith.mulf %184, %186 : vector<8x248xf32>
    %188 = arith.addf %183, %187 : vector<8x248xf32>
    %189 = vector.extract_strided_slice %92 {offsets = [0, 58], sizes = [8, 248], strides = [1, 1]} : vector<8x324xf32> to vector<8x248xf32>
    %190 = vector.extract_strided_slice %47 {offsets = [0, 25], sizes = [8, 1], strides = [1, 1]} : vector<8x33xf32> to vector<8x1xf32>
    %191 = vector.broadcast %190 : vector<8x1xf32> to vector<8x248xf32>
    %192 = arith.mulf %189, %191 : vector<8x248xf32>
    %193 = arith.addf %188, %192 : vector<8x248xf32>
    %194 = vector.extract_strided_slice %92 {offsets = [0, 72], sizes = [8, 248], strides = [1, 1]} : vector<8x324xf32> to vector<8x248xf32>
    %195 = vector.extract_strided_slice %47 {offsets = [0, 28], sizes = [8, 1], strides = [1, 1]} : vector<8x33xf32> to vector<8x1xf32>
    %196 = vector.broadcast %195 : vector<8x1xf32> to vector<8x248xf32>
    %197 = arith.mulf %194, %196 : vector<8x248xf32>
    %198 = arith.addf %193, %197 : vector<8x248xf32>
    %199 = vector.extract_strided_slice %92 {offsets = [0, 73], sizes = [8, 248], strides = [1, 1]} : vector<8x324xf32> to vector<8x248xf32>
    %200 = vector.extract_strided_slice %47 {offsets = [0, 29], sizes = [8, 1], strides = [1, 1]} : vector<8x33xf32> to vector<8x1xf32>
    %201 = vector.broadcast %200 : vector<8x1xf32> to vector<8x248xf32>
    %202 = arith.mulf %199, %201 : vector<8x248xf32>
    %203 = arith.addf %198, %202 : vector<8x248xf32>
    %204 = vector.extract_strided_slice %92 {offsets = [0, 74], sizes = [8, 248], strides = [1, 1]} : vector<8x324xf32> to vector<8x248xf32>
    %205 = vector.extract_strided_slice %47 {offsets = [0, 30], sizes = [8, 1], strides = [1, 1]} : vector<8x33xf32> to vector<8x1xf32>
    %206 = vector.broadcast %205 : vector<8x1xf32> to vector<8x248xf32>
    %207 = arith.mulf %204, %206 : vector<8x248xf32>
    %208 = arith.addf %203, %207 : vector<8x248xf32>
    %209 = vector.extract_strided_slice %92 {offsets = [0, 75], sizes = [8, 248], strides = [1, 1]} : vector<8x324xf32> to vector<8x248xf32>
    %210 = vector.extract_strided_slice %47 {offsets = [0, 31], sizes = [8, 1], strides = [1, 1]} : vector<8x33xf32> to vector<8x1xf32>
    %211 = vector.broadcast %210 : vector<8x1xf32> to vector<8x248xf32>
    %212 = arith.mulf %209, %211 : vector<8x248xf32>
    %213 = arith.addf %208, %212 : vector<8x248xf32>
    %214 = vector.extract_strided_slice %92 {offsets = [0, 76], sizes = [8, 248], strides = [1, 1]} : vector<8x324xf32> to vector<8x248xf32>
    %215 = vector.extract_strided_slice %47 {offsets = [0, 32], sizes = [8, 1], strides = [1, 1]} : vector<8x33xf32> to vector<8x1xf32>
    %216 = vector.broadcast %215 : vector<8x1xf32> to vector<8x248xf32>
    %217 = arith.mulf %214, %216 : vector<8x248xf32>
    %218 = arith.addf %213, %217 : vector<8x248xf32>
    %c0_37 = arith.constant 0 : index
    %c0_38 = arith.constant 0 : index
    %219 = vector.load %arg8[%c0_37, %c0_38] : memref<8x8xf32, #tpu.memory_space<vmem>>, vector<8x8xf32>
    %cst_39 = arith.constant dense<0.000000e+00> : vector<8x248xf32>
    %220 = tpu.matmul %219, %218, %cst_39 {dimension_numbers = #tpu.dot_dimension_numbers<[1], [0], [0], [1], [0, 0, 1, 1], [], []>} : vector<8x8xf32>, vector<8x248xf32>, vector<8x248xf32> -> vector<8x248xf32>
    %c0_40 = arith.constant 0 : index
    %c0_41 = arith.constant 0 : index
    %221 = vector.load %arg9[%c0_40, %c0_41] : memref<8x1xf32, #tpu.memory_space<vmem>>, vector<8x1xf32>
    %222 = vector.broadcast %221 : vector<8x1xf32> to vector<8x248xf32>
    %223 = arith.addf %220, %222 : vector<8x248xf32>
    %cst_42 = arith.constant 0.000000e+00 : f32
    %224 = vector.broadcast %cst_42 : f32 to vector<8x248xf32>
    %225 = arith.maximumf %223, %224 : vector<8x248xf32>
    %c0_43 = arith.constant 0 : index
    %c0_44 = arith.constant 0 : index
    %226 = vector.load %arg10[%c0_43, %c0_44] : memref<4x8xf32, #tpu.memory_space<vmem>>, vector<4x8xf32>
    %cst_45 = arith.constant dense<0.000000e+00> : vector<4x248xf32>
    %227 = tpu.matmul %226, %225, %cst_45 {dimension_numbers = #tpu.dot_dimension_numbers<[1], [0], [0], [1], [0, 0, 1, 1], [], []>} : vector<4x8xf32>, vector<8x248xf32>, vector<4x248xf32> -> vector<4x248xf32>
    %c0_46 = arith.constant 0 : index
    %c0_47 = arith.constant 0 : index
    %228 = vector.load %arg11[%c0_46, %c0_47] : memref<4x1xf32, #tpu.memory_space<vmem>>, vector<4x1xf32>
    %229 = vector.broadcast %228 : vector<4x1xf32> to vector<4x248xf32>
    %230 = arith.addf %227, %229 : vector<4x248xf32>
    %c0_48 = arith.constant 0 : index
    %c0_49 = arith.constant 0 : index
    %c0_50 = arith.constant 0 : index
    %231 = vector.load %arg12[%c0_48, %c0_49, %c0_50] : memref<1x4x248xf32, #tpu.memory_space<vmem>>, vector<1x4x248xf32>
    %232 = vector.shape_cast %231 : vector<1x4x248xf32> to vector<4x248xf32>
    %233 = vector.shape_cast %230 : vector<4x248xf32> to vector<1x4x248xf32>
    tpu.vector_store %arg12[%c0_48, %c0_49, %c0_50], %233 {strides = array<i32>} : memref<1x4x248xf32, #tpu.memory_space<vmem>>, vector<1x4x248xf32>,
    return
  }
  func.func @transform_0(%arg0: i32) -> (i32, i32, i32) {
    %c0_i32 = arith.constant 0 : i32
    %c0_i32_0 = arith.constant 0 : i32
    %c0_i32_1 = arith.constant 0 : i32
    return %arg0, %c0_i32, %c0_i32_0 : i32, i32, i32
  }
  func.func @transform_1(%arg0: i32) -> (i32, i32, i32) {
    %c0_i32 = arith.constant 0 : i32
    %c0_i32_0 = arith.constant 0 : i32
    %c0_i32_1 = arith.constant 0 : i32
    return %arg0, %c0_i32, %c0_i32_0 : i32, i32, i32
  }
  func.func @transform_2(%arg0: i32) -> (i32, i32) {
    %c0_i32 = arith.constant 0 : i32
    %c0_i32_0 = arith.constant 0 : i32
    %c0_i32_1 = arith.constant 0 : i32
    return %c0_i32, %c0_i32_0 : i32, i32
  }
  func.func @transform_3(%arg0: i32) -> (i32, i32) {
    %c0_i32 = arith.constant 0 : i32
    %c0_i32_0 = arith.constant 0 : i32
    %c0_i32_1 = arith.constant 0 : i32
    return %c0_i32, %c0_i32_0 : i32, i32
  }
  func.func @transform_4(%arg0: i32) -> (i32, i32) {
    %c0_i32 = arith.constant 0 : i32
    %c0_i32_0 = arith.constant 0 : i32
    %c0_i32_1 = arith.constant 0 : i32
    return %c0_i32, %c0_i32_0 : i32, i32
  }
  func.func @transform_5(%arg0: i32) -> (i32, i32) {
    %c0_i32 = arith.constant 0 : i32
    %c0_i32_0 = arith.constant 0 : i32
    %c0_i32_1 = arith.constant 0 : i32
    return %c0_i32, %c0_i32_0 : i32, i32
  }
  func.func @transform_6(%arg0: i32) -> (i32, i32) {
    %c0_i32 = arith.constant 0 : i32
    %c0_i32_0 = arith.constant 0 : i32
    %c0_i32_1 = arith.constant 0 : i32
    return %c0_i32, %c0_i32_0 : i32, i32
  }
  func.func @transform_7(%arg0: i32) -> (i32, i32) {
    %c0_i32 = arith.constant 0 : i32
    %c0_i32_0 = arith.constant 0 : i32
    %c0_i32_1 = arith.constant 0 : i32
    return %c0_i32, %c0_i32_0 : i32, i32
  }
  func.func @transform_8(%arg0: i32) -> (i32, i32) {
    %c0_i32 = arith.constant 0 : i32
    %c0_i32_0 = arith.constant 0 : i32
    %c0_i32_1 = arith.constant 0 : i32
    return %c0_i32, %c0_i32_0 : i32, i32
  }
  func.func @transform_9(%arg0: i32) -> (i32, i32) {
    %c0_i32 = arith.constant 0 : i32
    %c0_i32_0 = arith.constant 0 : i32
    %c0_i32_1 = arith.constant 0 : i32
    return %c0_i32, %c0_i32_0 : i32, i32
  }
  func.func @transform_10(%arg0: i32) -> (i32, i32) {
    %c0_i32 = arith.constant 0 : i32
    %c0_i32_0 = arith.constant 0 : i32
    %c0_i32_1 = arith.constant 0 : i32
    return %c0_i32, %c0_i32_0 : i32, i32
  }
  func.func @transform_11(%arg0: i32) -> (i32, i32, i32) {
    %c0_i32 = arith.constant 0 : i32
    %c0_i32_0 = arith.constant 0 : i32
    %c0_i32_1 = arith.constant 0 : i32
    return %arg0, %c0_i32, %c0_i32_0 : i32, i32, i32
  }
}

</mosaic_0001>

<llo_original>
// kernel: depth_corr_forward.1
$region0: #{depth_corr_forward.1}
  #allocation0 [shape = 'u32[]', space=smem, size = 0x4, offset = 0x4, fixed_abs, tag = 'smem constant byte address 0x4 - core index']
  #allocation1 [shape = 'u32[72,128]{1,0:T(1,128)}', space=vmem, size = 0x9000, scoped, tag = 'internal scratch']
  %s0 = inlined_call_operand.vmem [shape: f32[2,4,49], index: 0, kind: input, shape index: {}]
  %s1 = inlined_call_operand.vmem [shape: f32[2,4,378], index: 1, kind: input, shape index: {}]
  %s2 = inlined_call_operand.vmem [shape: f32[1,324], index: 2, kind: input, shape index: {}]
  %s3 = inlined_call_operand.vmem [shape: f32[8,36], index: 3, kind: input, shape index: {}]
  %s4 = inlined_call_operand.vmem [shape: f32[8,1], index: 4, kind: input, shape index: {}]
  %s5 = inlined_call_operand.vmem [shape: f32[8,36], index: 5, kind: input, shape index: {}]
  %s6 = inlined_call_operand.vmem [shape: f32[8,1], index: 6, kind: input, shape index: {}]
  %s7 = inlined_call_operand.vmem [shape: f32[8,8], index: 7, kind: input, shape index: {}]
  %s8 = inlined_call_operand.vmem [shape: f32[8,1], index: 8, kind: input, shape index: {}]
  %s9 = inlined_call_operand.vmem [shape: f32[4,8], index: 9, kind: input, shape index: {}]
  %s10 = inlined_call_operand.vmem [shape: f32[4,1], index: 10, kind: input, shape index: {}]
  %s11 = inlined_call_operand.vmem [shape: f32[2,4,248], index: 11, kind: output, shape index: {}]
  %s12 = sld [smem:[#allocation0]]
  $region77: #{depth_corr_forward.1} parent=0
    _
  %s14 = ssub.s32 1, %s12
  %s15 = scalar_select 0, %s14, %s12
  loop: start=0, step=1, limit=4
  $region2: #{depth_corr_forward.1} parent=0 // loop_pre_header
    _
  $region3: #{depth_corr_forward.1} parent=0 // loop_header
    %s17 = sphi 0, %s21
    %p18 = scmp.ge.s32.totalorder %s17, 4
    %s27 = sphi 0, %s29
    %s30 = sphi 0, %s27
    %s31 = sphi 0, %s30
    %s47 = sphi 0, %s31
    %s53 = sphi 0, %s55
    %s56 = sphi 0, %s53
    %s57 = sphi 0, %s56
    %s73 = sphi 0, %s57
    %s77 = sphi 0, %s77
    %s79 = sphi 0, %s77
    %s80 = sphi 0, %s79
    %s94 = sphi 0, %s80
    %s98 = sphi 0, %s98
    %s100 = sphi 0, %s98
    %s101 = sphi 0, %s100
    %s115 = sphi 0, %s101
    %s119 = sphi 0, %s119
    %s121 = sphi 0, %s119
    %s122 = sphi 0, %s121
    %s136 = sphi 0, %s122
    %s140 = sphi 0, %s140
    %s142 = sphi 0, %s140
    %s143 = sphi 0, %s142
    %s157 = sphi 0, %s143
    %s161 = sphi 0, %s161
    %s163 = sphi 0, %s161
    %s164 = sphi 0, %s163
    %s178 = sphi 0, %s164
    %s182 = sphi 0, %s182
    %s184 = sphi 0, %s182
    %s185 = sphi 0, %s184
    %s199 = sphi 0, %s185
    %s203 = sphi 0, %s203
    %s205 = sphi 0, %s203
    %s206 = sphi 0, %s205
    %s220 = sphi 0, %s206
    %s224 = sphi 0, %s224
    %s226 = sphi 0, %s224
    %s227 = sphi 0, %s226
    %s241 = sphi 0, %s227
    %s245 = sphi 0, %s245
    %s247 = sphi 0, %s245
    %s248 = sphi 0, %s247
    %s262 = sphi 0, %s248
    %s268 = sphi 0, %s270
    %s271 = sphi 0, %s268
    %s272 = sphi 0, %s271
    %s288 = sphi 0, %s272
  $region4: #{depth_corr_forward.1} parent=0 // loop_header_branch
    %20 = sbr.rel (%p18) target = $region8
  $region5: #{depth_corr_forward.1} parent=0 // loop_body
    %s22 = ssub.s32 %s17, 1
    %s23 = ssub.s32 %s17, 2
    %s24 = sadd.s32 %s17, 1
    %s25 = ssub.s32 %s17, %s24
    %p26 = scmp.eq.s32.totalorder %s25, 0
    %s28 = sadd.s32 %s27, 1
    %s29 = scalar_select %p26, %s27, %s28
    %p32 = pneg %p26
    %p33 = scmp.eq.s32.totalorder %s17, 1
    %p34 = por %p32, %p33
    %p35 = scmp.ne.s32.totalorder %s27, %s30
    %p36 = scmp.eq.s32.totalorder %s17, 0
    %p37 = por %p35, %p36
    %p38 = scmp.ne.s32.totalorder %s27, %s30
    %p39 = scmp.eq.s32.totalorder %s22, 1
    %p40 = por %p38, %p39
    %p41 = scmp.ne.s32.totalorder %s30, %s31
    %p42 = scmp.eq.s32.totalorder %s22, 0
    %p43 = por %p41, %p42
    %p44 = scmp.ne.s32.totalorder %s30, %s31
    %p45 = scmp.eq.s32.totalorder %s23, 1
    %p46 = por %p44, %p45
    %p48 = scmp.ne.s32.totalorder %s31, %s47
    %p49 = scmp.eq.s32.totalorder %s23, 0
    %p50 = por %p48, %p49
    %s51 = ssub.s32 %s17, %s24
    %p52 = scmp.eq.s32.totalorder %s51, 0
    %s54 = sadd.s32 %s53, 1
    %s55 = scalar_select %p52, %s53, %s54
    %p58 = pneg %p52
    %p59 = scmp.eq.s32.totalorder %s17, 1
    %p60 = por %p58, %p59
    %p61 = scmp.ne.s32.totalorder %s53, %s56
    %p62 = scmp.eq.s32.totalorder %s17, 0
    %p63 = por %p61, %p62
    %p64 = scmp.ne.s32.totalorder %s53, %s56
    %p65 = scmp.eq.s32.totalorder %s22, 1
    %p66 = por %p64, %p65
    %p67 = scmp.ne.s32.totalorder %s56, %s57
    %p68 = scmp.eq.s32.totalorder %s22, 0
    %p69 = por %p67, %p68
    %p70 = scmp.ne.s32.totalorder %s56, %s57
    %p71 = scmp.eq.s32.totalorder %s23, 1
    %p72 = por %p70, %p71
    %p74 = scmp.ne.s32.totalorder %s57, %s73
    %p75 = scmp.eq.s32.totalorder %s23, 0
    %p76 = por %p74, %p75
    %s78 = sadd.s32 %s77, 1
    %p81 = scmp.eq.s32.totalorder %s17, 1
    %p82 = scmp.ne.s32.totalorder %s77, %s79
    %p83 = scmp.eq.s32.totalorder %s17, 0
    %p84 = por %p82, %p83
    %p85 = scmp.ne.s32.totalorder %s77, %s79
    %p86 = scmp.eq.s32.totalorder %s22, 1
    %p87 = por %p85, %p86
    %p88 = scmp.ne.s32.totalorder %s79, %s80
    %p89 = scmp.eq.s32.totalorder %s22, 0
    %p90 = por %p88, %p89
    %p91 = scmp.ne.s32.totalorder %s79, %s80
    %p92 = scmp.eq.s32.totalorder %s23, 1
    %p93 = por %p91, %p92
    %p95 = scmp.ne.s32.totalorder %s80, %s94
    %p96 = scmp.eq.s32.totalorder %s23, 0
    %p97 = por %p95, %p96
    %s99 = sadd.s32 %s98, 1
    %p102 = scmp.eq.s32.totalorder %s17, 1
    %p103 = scmp.ne.s32.totalorder %s98, %s100
    %p104 = scmp.eq.s32.totalorder %s17, 0
    %p105 = por %p103, %p104
    %p106 = scmp.ne.s32.totalorder %s98, %s100
    %p107 = scmp.eq.s32.totalorder %s22, 1
    %p108 = por %p106, %p107
    %p109 = scmp.ne.s32.totalorder %s100, %s101
    %p110 = scmp.eq.s32.totalorder %s22, 0
    %p111 = por %p109, %p110
    %p112 = scmp.ne.s32.totalorder %s100, %s101
    %p113 = scmp.eq.s32.totalorder %s23, 1
    %p114 = por %p112, %p113
    %p116 = scmp.ne.s32.totalorder %s101, %s115
    %p117 = scmp.eq.s32.totalorder %s23, 0
    %p118 = por %p116, %p117
    %s120 = sadd.s32 %s119, 1
    %p123 = scmp.eq.s32.totalorder %s17, 1
    %p124 = scmp.ne.s32.totalorder %s119, %s121
    %p125 = scmp.eq.s32.totalorder %s17, 0
    %p126 = por %p124, %p125
    %p127 = scmp.ne.s32.totalorder %s119, %s121
    %p128 = scmp.eq.s32.totalorder %s22, 1
    %p129 = por %p127, %p128
    %p130 = scmp.ne.s32.totalorder %s121, %s122
    %p131 = scmp.eq.s32.totalorder %s22, 0
    %p132 = por %p130, %p131
    %p133 = scmp.ne.s32.totalorder %s121, %s122
    %p134 = scmp.eq.s32.totalorder %s23, 1
    %p135 = por %p133, %p134
    %p137 = scmp.ne.s32.totalorder %s122, %s136
    %p138 = scmp.eq.s32.totalorder %s23, 0
    %p139 = por %p137, %p138
    %s141 = sadd.s32 %s140, 1
    %p144 = scmp.eq.s32.totalorder %s17, 1
    %p145 = scmp.ne.s32.totalorder %s140, %s142
    %p146 = scmp.eq.s32.totalorder %s17, 0
    %p147 = por %p145, %p146
    %p148 = scmp.ne.s32.totalorder %s140, %s142
    %p149 = scmp.eq.s32.totalorder %s22, 1
    %p150 = por %p148, %p149
    %p151 = scmp.ne.s32.totalorder %s142, %s143
    %p152 = scmp.eq.s32.totalorder %s22, 0
    %p153 = por %p151, %p152
    %p154 = scmp.ne.s32.totalorder %s142, %s143
    %p155 = scmp.eq.s32.totalorder %s23, 1
    %p156 = por %p154, %p155
    %p158 = scmp.ne.s32.totalorder %s143, %s157
    %p159 = scmp.eq.s32.totalorder %s23, 0
    %p160 = por %p158, %p159
    %s162 = sadd.s32 %s161, 1
    %p165 = scmp.eq.s32.totalorder %s17, 1
    %p166 = scmp.ne.s32.totalorder %s161, %s163
    %p167 = scmp.eq.s32.totalorder %s17, 0
    %p168 = por %p166, %p167
    %p169 = scmp.ne.s32.totalorder %s161, %s163
    %p170 = scmp.eq.s32.totalorder %s22, 1
    %p171 = por %p169, %p170
    %p172 = scmp.ne.s32.totalorder %s163, %s164
    %p173 = scmp.eq.s32.totalorder %s22, 0
    %p174 = por %p172, %p173
    %p175 = scmp.ne.s32.totalorder %s163, %s164
    %p176 = scmp.eq.s32.totalorder %s23, 1
    %p177 = por %p175, %p176
    %p179 = scmp.ne.s32.totalorder %s164, %s178
    %p180 = scmp.eq.s32.totalorder %s23, 0
    %p181 = por %p179, %p180
    %s183 = sadd.s32 %s182, 1
    %p186 = scmp.eq.s32.totalorder %s17, 1
    %p187 = scmp.ne.s32.totalorder %s182, %s184
    %p188 = scmp.eq.s32.totalorder %s17, 0
    %p189 = por %p187, %p188
    %p190 = scmp.ne.s32.totalorder %s182, %s184
    %p191 = scmp.eq.s32.totalorder %s22, 1
    %p192 = por %p190, %p191
    %p193 = scmp.ne.s32.totalorder %s184, %s185
    %p194 = scmp.eq.s32.totalorder %s22, 0
    %p195 = por %p193, %p194
    %p196 = scmp.ne.s32.totalorder %s184, %s185
    %p197 = scmp.eq.s32.totalorder %s23, 1
    %p198 = por %p196, %p197
    %p200 = scmp.ne.s32.totalorder %s185, %s199
    %p201 = scmp.eq.s32.totalorder %s23, 0
    %p202 = por %p200, %p201
    %s204 = sadd.s32 %s203, 1
    %p207 = scmp.eq.s32.totalorder %s17, 1
    %p208 = scmp.ne.s32.totalorder %s203, %s205
    %p209 = scmp.eq.s32.totalorder %s17, 0
    %p210 = por %p208, %p209
    %p211 = scmp.ne.s32.totalorder %s203, %s205
    %p212 = scmp.eq.s32.totalorder %s22, 1
    %p213 = por %p211, %p212
    %p214 = scmp.ne.s32.totalorder %s205, %s206
    %p215 = scmp.eq.s32.totalorder %s22, 0
    %p216 = por %p214, %p215
    %p217 = scmp.ne.s32.totalorder %s205, %s206
    %p218 = scmp.eq.s32.totalorder %s23, 1
    %p219 = por %p217, %p218
    %p221 = scmp.ne.s32.totalorder %s206, %s220
    %p222 = scmp.eq.s32.totalorder %s23, 0
    %p223 = por %p221, %p222
    %s225 = sadd.s32 %s224, 1
    %p228 = scmp.eq.s32.totalorder %s17, 1
    %p229 = scmp.ne.s32.totalorder %s224, %s226
    %p230 = scmp.eq.s32.totalorder %s17, 0
    %p231 = por %p229, %p230
    %p232 = scmp.ne.s32.totalorder %s224, %s226
    %p233 = scmp.eq.s32.totalorder %s22, 1
    %p234 = por %p232, %p233
    %p235 = scmp.ne.s32.totalorder %s226, %s227
    %p236 = scmp.eq.s32.totalorder %s22, 0
    %p237 = por %p235, %p236
    %p238 = scmp.ne.s32.totalorder %s226, %s227
    %p239 = scmp.eq.s32.totalorder %s23, 1
    %p240 = por %p238, %p239
    %p242 = scmp.ne.s32.totalorder %s227, %s241
    %p243 = scmp.eq.s32.totalorder %s23, 0
    %p244 = por %p242, %p243
    %s246 = sadd.s32 %s245, 1
    %p249 = scmp.eq.s32.totalorder %s17, 1
    %p250 = scmp.ne.s32.totalorder %s245, %s247
    %p251 = scmp.eq.s32.totalorder %s17, 0
    %p252 = por %p250, %p251
    %p253 = scmp.ne.s32.totalorder %s245, %s247
    %p254 = scmp.eq.s32.totalorder %s22, 1
    %p255 = por %p253, %p254
    %p256 = scmp.ne.s32.totalorder %s247, %s248
    %p257 = scmp.eq.s32.totalorder %s22, 0
    %p258 = por %p256, %p257
    %p259 = scmp.ne.s32.totalorder %s247, %s248
    %p260 = scmp.eq.s32.totalorder %s23, 1
    %p261 = por %p259, %p260
    %p263 = scmp.ne.s32.totalorder %s248, %s262
    %p264 = scmp.eq.s32.totalorder %s23, 0
    %p265 = por %p263, %p264
    %s266 = ssub.s32 %s17, %s24
    %p267 = scmp.eq.s32.totalorder %s266, 0
    %s269 = sadd.s32 %s268, 1
    %s270 = scalar_select %p267, %s268, %s269
    %p273 = pneg %p267
    %p274 = scmp.eq.s32.totalorder %s17, 1
    %p275 = por %p273, %p274
    %p276 = scmp.ne.s32.totalorder %s268, %s271
    %p277 = scmp.eq.s32.totalorder %s17, 0
    %p278 = por %p276, %p277
    %p279 = scmp.ne.s32.totalorder %s268, %s271
    %p280 = scmp.eq.s32.totalorder %s22, 1
    %p281 = por %p279, %p280
    %p282 = scmp.ne.s32.totalorder %s271, %s272
    %p283 = scmp.eq.s32.totalorder %s22, 0
    %p284 = por %p282, %p283
    %p285 = scmp.ne.s32.totalorder %s271, %s272
    %p286 = scmp.eq.s32.totalorder %s23, 1
    %p287 = por %p285, %p286
    %p289 = scmp.ne.s32.totalorder %s272, %s288
    %p290 = scmp.eq.s32.totalorder %s23, 0
    %p291 = por %p289, %p290
    %p292 = scmp.le.s32.totalorder 1, %s17
    %p293 = scmp.lt.s32.totalorder %s17, 3
    %p294 = pnand %p292, %p293
    %p295 = pneg %p294
    // Predicated region
    $region9: #{depth_corr_forward.1} parent=5 // pred_check
      _
    $region10: #{depth_corr_forward.1} parent=5 // pred_check_branch
      %297 = sbr.rel (%p294) target = $region12
    $region11: #{depth_corr_forward.1} parent=5 // pred_region
      %s298 = ssub.s32 %s17, 1
      // Predicated region
      $region13: #{depth_corr_forward.1} parent=11 // pred_check
        %p299 = pneg %p90
      $region14: #{depth_corr_forward.1} parent=11 // pred_check_branch
        %301 = sbr.rel (%p299) target = $region16
      $region15: #{depth_corr_forward.1} parent=11 // pred_region
        _
      $region16: #{depth_corr_forward.1} parent=11 // pred_fallthru
        _
      // Predicated region
      $region17: #{depth_corr_forward.1} parent=11 // pred_check
        %p302 = pneg %p111
      $region18: #{depth_corr_forward.1} parent=11 // pred_check_branch
        %304 = sbr.rel (%p302) target = $region20
      $region19: #{depth_corr_forward.1} parent=11 // pred_region
        _
      $region20: #{depth_corr_forward.1} parent=11 // pred_fallthru
        _
      // Predicated region
      $region21: #{depth_corr_forward.1} parent=11 // pred_check
        %p305 = pneg %p132
      $region22: #{depth_corr_forward.1} parent=11 // pred_check_branch
        %307 = sbr.rel (%p305) target = $region24
      $region23: #{depth_corr_forward.1} parent=11 // pred_region
        _
      $region24: #{depth_corr_forward.1} parent=11 // pred_fallthru
        _
      // Predicated region
      $region25: #{depth_corr_forward.1} parent=11 // pred_check
        %p308 = pneg %p153
      $region26: #{depth_corr_forward.1} parent=11 // pred_check_branch
        %310 = sbr.rel (%p308) target = $region28
      $region27: #{depth_corr_forward.1} parent=11 // pred_region
        _
      $region28: #{depth_corr_forward.1} parent=11 // pred_fallthru
        _
      // Predicated region
      $region29: #{depth_corr_forward.1} parent=11 // pred_check
        %p311 = pneg %p174
      $region30: #{depth_corr_forward.1} parent=11 // pred_check_branch
        %313 = sbr.rel (%p311) target = $region32
      $region31: #{depth_corr_forward.1} parent=11 // pred_region
        _
      $region32: #{depth_corr_forward.1} parent=11 // pred_fallthru
        _
      // Predicated region
      $region33: #{depth_corr_forward.1} parent=11 // pred_check
        %p314 = pneg %p195
      $region34: #{depth_corr_forward.1} parent=11 // pred_check_branch
        %316 = sbr.rel (%p314) target = $region36
      $region35: #{depth_corr_forward.1} parent=11 // pred_region
        _
      $region36: #{depth_corr_forward.1} parent=11 // pred_fallthru
        _
      // Predicated region
      $region37: #{depth_corr_forward.1} parent=11 // pred_check
        %p317 = pneg %p216
      $region38: #{depth_corr_forward.1} parent=11 // pred_check_branch
        %319 = sbr.rel (%p317) target = $region40
      $region39: #{depth_corr_forward.1} parent=11 // pred_region
        _
      $region40: #{depth_corr_forward.1} parent=11 // pred_fallthru
        _
      // Predicated region
      $region41: #{depth_corr_forward.1} parent=11 // pred_check
        %p320 = pneg %p237
      $region42: #{depth_corr_forward.1} parent=11 // pred_check_branch
        %322 = sbr.rel (%p320) target = $region44
      $region43: #{depth_corr_forward.1} parent=11 // pred_region
        _
      $region44: #{depth_corr_forward.1} parent=11 // pred_fallthru
        _
      // Predicated region
      $region45: #{depth_corr_forward.1} parent=11 // pred_check
        %p323 = pneg %p258
      $region46: #{depth_corr_forward.1} parent=11 // pred_check_branch
        %325 = sbr.rel (%p323) target = $region48
      $region47: #{depth_corr_forward.1} parent=11 // pred_region
        _
      $region48: #{depth_corr_forward.1} parent=11 // pred_fallthru
        _
    $region12: #{depth_corr_forward.1} parent=5 // pred_fallthru
      _
    %p326 = scmp.lt.s32.totalorder %s17, 2
    // Predicated region
    $region49: #{depth_corr_forward.1} parent=5 // pred_check
      %p327 = pneg %p326
    $region50: #{depth_corr_forward.1} parent=5 // pred_check_branch
      %329 = sbr.rel (%p327) target = $region52
    $region51: #{depth_corr_forward.1} parent=5 // pred_region
      // Predicated region
      $region53: #{depth_corr_forward.1} parent=51 // pred_check
        %p330 = pneg %p37
      $region54: #{depth_corr_forward.1} parent=51 // pred_check_branch
        %332 = sbr.rel (%p330) target = $region56
      $region55: #{depth_corr_forward.1} parent=51 // pred_region
        %p333 = scmp.lt.s32.totalorder %s17, 1
        %s334 = scalar_select %p333, %s17, 1
        %s335 = smul.addr %s334, 4
        %s336 = scalar_lea.vmem %s0, %s335
      $region56: #{depth_corr_forward.1} parent=51 // pred_fallthru
        _
      // Predicated region
      $region57: #{depth_corr_forward.1} parent=51 // pred_check
        %p337 = pneg %p63
      $region58: #{depth_corr_forward.1} parent=51 // pred_check_branch
        %339 = sbr.rel (%p337) target = $region60
      $region59: #{depth_corr_forward.1} parent=51 // pred_region
        %p340 = scmp.lt.s32.totalorder %s17, 1
        %s341 = scalar_select %p340, %s17, 1
        %s342 = smul.addr %s341, 3
        %s343 = smul.addr %s342, 4
        %s344 = scalar_lea.vmem %s1, %s343
      $region60: #{depth_corr_forward.1} parent=51 // pred_fallthru
        _
    $region52: #{depth_corr_forward.1} parent=5 // pred_fallthru
      _
    %p345 = scmp.le.s32.totalorder 1, %s17
    %p346 = scmp.lt.s32.totalorder %s17, 3
    %p347 = pnand %p345, %p346
    %p348 = pneg %p347
    // Predicated region
    $region61: #{depth_corr_forward.1} parent=5 // pred_check
      _
    $region62: #{depth_corr_forward.1} parent=5 // pred_check_branch
      %350 = sbr.rel (%p347) target = $region64
    $region63: #{depth_corr_forward.1} parent=5 // pred_region
      %s351 = ssub.s32 %s17, 1
      %p352 = scmp.lt.s32.totalorder %s22, 1
      %s353 = scalar_select %p352, %s22, 1
      %s354 = smul.addr %s353, 4
      %s355 = scalar_lea.vmem %s0, %s354
      %p356 = pneg %p43
      %p357 = pneg %p40
      %p358 = scmp.lt.s32.totalorder %s22, 1
      %s359 = scalar_select %p358, %s22, 1
      %s360 = smul.addr %s359, 3
      %s361 = smul.addr %s360, 4
      %s362 = scalar_lea.vmem %s1, %s361
      %p363 = pneg %p69
      %p364 = pneg %p66
      %p365 = pneg %p90
      %p366 = pneg %p87
      %p367 = pneg %p111
      %p368 = pneg %p108
      %p369 = pneg %p132
      %p370 = pneg %p129
      %p371 = pneg %p153
      %p372 = pneg %p150
      %p373 = pneg %p174
      %p374 = pneg %p171
      %p375 = pneg %p195
      %p376 = pneg %p192
      %p377 = pneg %p216
      %p378 = pneg %p213
      %p379 = pneg %p237
      %p380 = pneg %p234
      %p381 = pneg %p258
      %p382 = pneg %p255
      %p383 = pneg %p284
      %p384 = pneg %p281
      %p385 = scmp.lt.s32.totalorder %s22, 1
      %s386 = scalar_select %p385, %s22, 1
      %s387 = smul.addr %s386, 2
      %s388 = smul.addr %s387, 4
      %s389 = scalar_lea.vmem %s11, %s388
      %p390 = scmp.lt.s32.totalorder %s22, 1
      %s391 = scalar_select %p390, %s22, 1
      %s392 = smul.addr %s391, 4
      %s393 = scalar_lea.vmem %s0, %s392
      %p394 = scmp.lt.s32.totalorder %s22, 1
      %s395 = scalar_select %p394, %s22, 1
      %s396 = smul.addr %s395, 3
      %s397 = smul.addr %s396, 4
      %s398 = scalar_lea.vmem %s1, %s397
      %p399 = scmp.lt.s32.totalorder %s22, 1
      %s400 = scalar_select %p399, %s22, 1
      %s401 = smul.addr %s400, 2
      %s402 = smul.addr %s401, 4
      %s403 = scalar_lea.vmem %s11, %s402
      %v404 = vld [vmem:[%s393] sm:$0xf]
      %v405 = vld [vmem:[%s398] sm:$0xff]
      %v406 = vld [vmem:[%s398 + $0x8] sm:$0xf]
      %v407 = vld [vmem:[%s3] sm:$0xff]
      %v408 = vld [vmem:[%s5] sm:$0xff]
      %410 = vrot.lane.b32.xlu0 %v407, 124
      %v411 = vpop.permute.xlu0 %410
      %413 = vrot.lane.b32.xlu0 %v404, 127
      %v414 = vpop.permute.xlu0 %413
      %vm415 = vcmask 31744
      %v416 = vsel %vm415, %v411, 0
      %vm418 = vcmask 1043456
      %v419 = vsel %vm418, %v414, 0
      %421 = vmatpush.msra.mxu0 0.0
      %422 = vmatpush.msra.mxu0 0.0
      %423 = vmatpush.msra.mxu0 0.0
      %424 = vmatpush.msra.mxu0 0.0
      %425 = vmatpush.msra.mxu0 0.0
      %426 = vmatpush.msra.mxu0 0.0
      %427 = vmatpush.msra.mxu0 0.0
      %428 = vmatpush.msra.mxu0 0.0
      %429 = vmatpush.msra.mxu0 0.0
      %430 = vmatpush.msra.mxu0 0.0
      %431 = vmatpush.msra.mxu0 0.0
      %432 = vmatpush.msra.mxu0 0.0
      %433 = vmatpush.msra.mxu0 0.0
      %434 = vmatpush.msra.mxu0 0.0
      %435 = vmatpush.msra.mxu0 0.0
      %436 = vmatpush.msra.mxu0 %v419
      %437 = vmatmul.f32.gmra.mxu0 %v416
      %v438 = vpop.f32.mrf.mxu0
      %v439 = vadd.f32 0.0, %v438
      %440 = vdwg.mxu0
      %v441 = vsel %vm415, %v407, 0
      %v443 = vsel %vm418, %v404, 0
      %445 = vmatpush.msra.mxu0 0.0
      %446 = vmatpush.msra.mxu0 0.0
      %447 = vmatpush.msra.mxu0 0.0
      %448 = vmatpush.msra.mxu0 0.0
      %449 = vmatpush.msra.mxu0 0.0
      %450 = vmatpush.msra.mxu0 0.0
      %451 = vmatpush.msra.mxu0 0.0
      %452 = vmatpush.msra.mxu0 0.0
      %453 = vmatpush.msra.mxu0 0.0
      %454 = vmatpush.msra.mxu0 0.0
      %455 = vmatpush.msra.mxu0 0.0
      %456 = vmatpush.msra.mxu0 0.0
      %457 = vmatpush.msra.mxu0 0.0
      %458 = vmatpush.msra.mxu0 0.0
      %459 = vmatpush.msra.mxu0 0.0
      %460 = vmatpush.msra.mxu0 %v443
      %461 = vmatmul.f32.gmra.mxu0 %v441
      %v462 = vpop.f32.mrf.mxu0
      %v463 = vadd.f32 %v439, %v462
      %464 = vdwg.mxu0
      %465 = vrot.lane.b32.xlu0 %v407, 120
      %v466 = vpop.permute.xlu0 %465
      %467 = vrot.lane.b32.xlu0 %v404, 126
      %v468 = vpop.permute.xlu0 %467
      %v469 = vsel %vm415, %v466, 0
      %v471 = vsel %vm418, %v468, 0
      %473 = vmatpush.msra.mxu0 0.0
      %474 = vmatpush.msra.mxu0 0.0
      %475 = vmatpush.msra.mxu0 0.0
      %476 = vmatpush.msra.mxu0 0.0
      %477 = vmatpush.msra.mxu0 0.0
      %478 = vmatpush.msra.mxu0 0.0
      %479 = vmatpush.msra.mxu0 0.0
      %480 = vmatpush.msra.mxu0 0.0
      %481 = vmatpush.msra.mxu0 0.0
      %482 = vmatpush.msra.mxu0 0.0
      %483 = vmatpush.msra.mxu0 0.0
      %484 = vmatpush.msra.mxu0 0.0
      %485 = vmatpush.msra.mxu0 0.0
      %486 = vmatpush.msra.mxu0 0.0
      %487 = vmatpush.msra.mxu0 0.0
      %488 = vmatpush.msra.mxu0 %v471
      %489 = vmatmul.f32.gmra.mxu0 %v469
      %v490 = vpop.f32.mrf.mxu0
      %v491 = vadd.f32 0.0, %v490
      %492 = vdwg.mxu0
      %v493 = vadd.f32 %v463, %v491
      %494 = vrot.lane.b32.xlu0 %v407, 116
      %v495 = vpop.permute.xlu0 %494
      %496 = vrot.lane.b32.xlu0 %v404, 121
      %v497 = vpop.permute.xlu0 %496
      %v498 = vsel %vm415, %v495, 0
      %v500 = vsel %vm418, %v497, 0
      %502 = vmatpush.msra.mxu0 0.0
      %503 = vmatpush.msra.mxu0 0.0
      %504 = vmatpush.msra.mxu0 0.0
      %505 = vmatpush.msra.mxu0 0.0
      %506 = vmatpush.msra.mxu0 0.0
      %507 = vmatpush.msra.mxu0 0.0
      %508 = vmatpush.msra.mxu0 0.0
      %509 = vmatpush.msra.mxu0 0.0
      %510 = vmatpush.msra.mxu0 0.0
      %511 = vmatpush.msra.mxu0 0.0
      %512 = vmatpush.msra.mxu0 0.0
      %513 = vmatpush.msra.mxu0 0.0
      %514 = vmatpush.msra.mxu0 0.0
      %515 = vmatpush.msra.mxu0 0.0
      %516 = vmatpush.msra.mxu0 0.0
      %517 = vmatpush.msra.mxu0 %v500
      %518 = vmatmul.f32.gmra.mxu0 %v498
      %v519 = vpop.f32.mrf.mxu0
      %v520 = vadd.f32 0.0, %v519
      %521 = vdwg.mxu0
      %v522 = vadd.f32 %v493, %v520
      %523 = vrot.lane.b32.xlu0 %v407, 112
      %v524 = vpop.permute.xlu0 %523
      %525 = vrot.lane.b32.xlu0 %v404, 120
      %v526 = vpop.permute.xlu0 %525
      %v527 = vsel %vm415, %v524, 0
      %v529 = vsel %vm418, %v526, 0
      %531 = vmatpush.msra.mxu0 0.0
      %532 = vmatpush.msra.mxu0 0.0
      %533 = vmatpush.msra.mxu0 0.0
      %534 = vmatpush.msra.mxu0 0.0
      %535 = vmatpush.msra.mxu0 0.0
      %536 = vmatpush.msra.mxu0 0.0
      %537 = vmatpush.msra.mxu0 0.0
      %538 = vmatpush.msra.mxu0 0.0
      %539 = vmatpush.msra.mxu0 0.0
      %540 = vmatpush.msra.mxu0 0.0
      %541 = vmatpush.msra.mxu0 0.0
      %542 = vmatpush.msra.mxu0 0.0
      %543 = vmatpush.msra.mxu0 0.0
      %544 = vmatpush.msra.mxu0 0.0
      %545 = vmatpush.msra.mxu0 0.0
      %546 = vmatpush.msra.mxu0 %v529
      %547 = vmatmul.f32.gmra.mxu0 %v527
      %v548 = vpop.f32.mrf.mxu0
      %v549 = vadd.f32 0.0, %v548
      %550 = vdwg.mxu0
      %v551 = vadd.f32 %v522, %v549
      %552 = vrot.lane.b32.xlu0 %v407, 108
      %v553 = vpop.permute.xlu0 %552
      %554 = vrot.lane.b32.xlu0 %v404, 119
      %v555 = vpop.permute.xlu0 %554
      %v556 = vsel %vm415, %v553, 0
      %v558 = vsel %vm418, %v555, 0
      %560 = vmatpush.msra.mxu0 0.0
      %561 = vmatpush.msra.mxu0 0.0
      %562 = vmatpush.msra.mxu0 0.0
      %563 = vmatpush.msra.mxu0 0.0
      %564 = vmatpush.msra.mxu0 0.0
      %565 = vmatpush.msra.mxu0 0.0
      %566 = vmatpush.msra.mxu0 0.0
      %567 = vmatpush.msra.mxu0 0.0
      %568 = vmatpush.msra.mxu0 0.0
      %569 = vmatpush.msra.mxu0 0.0
      %570 = vmatpush.msra.mxu0 0.0
      %571 = vmatpush.msra.mxu0 0.0
      %572 = vmatpush.msra.mxu0 0.0
      %573 = vmatpush.msra.mxu0 0.0
      %574 = vmatpush.msra.mxu0 0.0
      %575 = vmatpush.msra.mxu0 %v558
      %576 = vmatmul.f32.gmra.mxu0 %v556
      %v577 = vpop.f32.mrf.mxu0
      %v578 = vadd.f32 0.0, %v577
      %579 = vdwg.mxu0
      %v580 = vadd.f32 %v551, %v578
      %581 = vrot.lane.b32.xlu0 %v407, 104
      %v582 = vpop.permute.xlu0 %581
      %583 = vrot.lane.b32.xlu0 %v404, 114
      %v584 = vpop.permute.xlu0 %583
      %v585 = vsel %vm415, %v582, 0
      %v587 = vsel %vm418, %v584, 0
      %589 = vmatpush.msra.mxu0 0.0
      %590 = vmatpush.msra.mxu0 0.0
      %591 = vmatpush.msra.mxu0 0.0
      %592 = vmatpush.msra.mxu0 0.0
      %593 = vmatpush.msra.mxu0 0.0
      %594 = vmatpush.msra.mxu0 0.0
      %595 = vmatpush.msra.mxu0 0.0
      %596 = vmatpush.msra.mxu0 0.0
      %597 = vmatpush.msra.mxu0 0.0
      %598 = vmatpush.msra.mxu0 0.0
      %599 = vmatpush.msra.mxu0 0.0
      %600 = vmatpush.msra.mxu0 0.0
      %601 = vmatpush.msra.mxu0 0.0
      %602 = vmatpush.msra.mxu0 0.0
      %603 = vmatpush.msra.mxu0 0.0
      %604 = vmatpush.msra.mxu0 %v587
      %605 = vmatmul.f32.gmra.mxu0 %v585
      %v606 = vpop.f32.mrf.mxu0
      %v607 = vadd.f32 0.0, %v606
      %608 = vdwg.mxu0
      %v609 = vadd.f32 %v580, %v607
      %610 = vrot.lane.b32.xlu0 %v407, 100
      %v611 = vpop.permute.xlu0 %610
      %612 = vrot.lane.b32.xlu0 %v404, 113
      %v613 = vpop.permute.xlu0 %612
      %v614 = vsel %vm415, %v611, 0
      %v616 = vsel %vm418, %v613, 0
      %618 = vmatpush.msra.mxu0 0.0
      %619 = vmatpush.msra.mxu0 0.0
      %620 = vmatpush.msra.mxu0 0.0
      %621 = vmatpush.msra.mxu0 0.0
      %622 = vmatpush.msra.mxu0 0.0
      %623 = vmatpush.msra.mxu0 0.0
      %624 = vmatpush.msra.mxu0 0.0
      %625 = vmatpush.msra.mxu0 0.0
      %626 = vmatpush.msra.mxu0 0.0
      %627 = vmatpush.msra.mxu0 0.0
      %628 = vmatpush.msra.mxu0 0.0
      %629 = vmatpush.msra.mxu0 0.0
      %630 = vmatpush.msra.mxu0 0.0
      %631 = vmatpush.msra.mxu0 0.0
      %632 = vmatpush.msra.mxu0 0.0
      %633 = vmatpush.msra.mxu0 %v616
      %634 = vmatmul.f32.gmra.mxu0 %v614
      %v635 = vpop.f32.mrf.mxu0
      %v636 = vadd.f32 0.0, %v635
      %637 = vdwg.mxu0
      %v638 = vadd.f32 %v609, %v636
      %639 = vrot.lane.b32.xlu0 %v407, 96
      %v640 = vpop.permute.xlu0 %639
      %641 = vrot.lane.b32.xlu0 %v404, 112
      %v642 = vpop.permute.xlu0 %641
      %v643 = vsel %vm415, %v640, 0
      %v645 = vsel %vm418, %v642, 0
      %647 = vmatpush.msra.mxu0 0.0
      %648 = vmatpush.msra.mxu0 0.0
      %649 = vmatpush.msra.mxu0 0.0
      %650 = vmatpush.msra.mxu0 0.0
      %651 = vmatpush.msra.mxu0 0.0
      %652 = vmatpush.msra.mxu0 0.0
      %653 = vmatpush.msra.mxu0 0.0
      %654 = vmatpush.msra.mxu0 0.0
      %655 = vmatpush.msra.mxu0 0.0
      %656 = vmatpush.msra.mxu0 0.0
      %657 = vmatpush.msra.mxu0 0.0
      %658 = vmatpush.msra.mxu0 0.0
      %659 = vmatpush.msra.mxu0 0.0
      %660 = vmatpush.msra.mxu0 0.0
      %661 = vmatpush.msra.mxu0 0.0
      %662 = vmatpush.msra.mxu0 %v645
      %663 = vmatmul.f32.gmra.mxu0 %v643
      %v664 = vpop.f32.mrf.mxu0
      %v665 = vadd.f32 0.0, %v664
      %666 = vdwg.mxu0
      %v667 = vadd.f32 %v638, %v665
      %v668 = vld [vmem:[%s4] sm:$0xff]
      %670 = vset.pattern.permute.xlu0 0
      %671 = vperm.xlu0 %670, %v668
      %v672 = vpop.permute.xlu0 %671
      %v674 = vadd.f32 %v667, %v672
      %v675 = vmax.f32 %v674, 0.0
      %677 = vrot.lane.b32.xlu0 %v408, 124
      %v678 = vpop.permute.xlu0 %677
      %681 = vst [vmem:[#allocation1] ss:$2 sm:$0xff] %v405
      %s682 = scalar_lea.vmem [#allocation1], 16
      %683 = vst [vmem:[%s682] ss:$2 sm:$0xff] %v406
      %v684 = vld.sshfl [vmem:[#allocation1] sm:$0xff pattern:$0x75316420]
      %v685 = vld.sshfl [vmem:[#allocation1 + $0x8] sm:$0xff pattern:$0x75316420]
      %v686 = vld.sshfl [vmem:[#allocation1 + $0x10] sm:$0xff pattern:$0x75316420]
      %687 = vrot.lane.b32.xlu0 %v684, 127
      %v688 = vpop.permute.xlu0 %687
      %689 = vrot.lane.b32.xlu0 %v685, 127
      %v690 = vpop.permute.xlu0 %689
      %691 = vrot.lane.b32.xlu0 %v686, 127
      %v692 = vpop.permute.xlu0 %691
      %vm693 = vcmask 1039360
      %v694 = vsel %vm693, %v688, %v690
      %v695 = vsel %vm693, %v690, %v692
      %v696 = vsel %vm415, %v678, 0
      %v698 = vsel %vm418, %v694, 0
      %v700 = vsel %vm418, %v695, 0
      %v702 = vsel %vm418, %v692, 0
      %704 = vmatpush.msra.mxu0 0.0
      %705 = vmatpush.msra.mxu0 0.0
      %706 = vmatpush.msra.mxu0 0.0
      %707 = vmatpush.msra.mxu0 0.0
      %708 = vmatpush.msra.mxu0 0.0
      %709 = vmatpush.msra.mxu0 0.0
      %710 = vmatpush.msra.mxu0 0.0
      %711 = vmatpush.msra.mxu0 0.0
      %712 = vmatpush.msra.mxu0 0.0
      %713 = vmatpush.msra.mxu0 0.0
      %714 = vmatpush.msra.mxu0 0.0
      %715 = vmatpush.msra.mxu0 0.0
      %716 = vmatpush.msra.mxu0 0.0
      %717 = vmatpush.msra.mxu0 0.0
      %718 = vmatpush.msra.mxu0 0.0
      %719 = vmatpush.msra.mxu0 %v698
      %720 = vmatmul.f32.gmra.mxu0 %v696
      %v721 = vpop.f32.mrf.mxu0
      %v722 = vadd.f32 0.0, %v721
      %723 = vdwg.mxu0
      %724 = vmatpush.msra.mxu0 0.0
      %725 = vmatpush.msra.mxu0 0.0
      %726 = vmatpush.msra.mxu0 0.0
      %727 = vmatpush.msra.mxu0 0.0
      %728 = vmatpush.msra.mxu0 0.0
      %729 = vmatpush.msra.mxu0 0.0
      %730 = vmatpush.msra.mxu0 0.0
      %731 = vmatpush.msra.mxu0 0.0
      %732 = vmatpush.msra.mxu0 0.0
      %733 = vmatpush.msra.mxu0 0.0
      %734 = vmatpush.msra.mxu0 0.0
      %735 = vmatpush.msra.mxu0 0.0
      %736 = vmatpush.msra.mxu0 0.0
      %737 = vmatpush.msra.mxu0 0.0
      %738 = vmatpush.msra.mxu0 0.0
      %739 = vmatpush.msra.mxu0 %v700
      %740 = vmatmul.f32.gmra.mxu0 %v696
      %v741 = vpop.f32.mrf.mxu0
      %v742 = vadd.f32 0.0, %v741
      %743 = vdwg.mxu0
      %744 = vmatpush.msra.mxu0 0.0
      %745 = vmatpush.msra.mxu0 0.0
      %746 = vmatpush.msra.mxu0 0.0
      %747 = vmatpush.msra.mxu0 0.0
      %748 = vmatpush.msra.mxu0 0.0
      %749 = vmatpush.msra.mxu0 0.0
      %750 = vmatpush.msra.mxu0 0.0
      %751 = vmatpush.msra.mxu0 0.0
      %752 = vmatpush.msra.mxu0 0.0
      %753 = vmatpush.msra.mxu0 0.0
      %754 = vmatpush.msra.mxu0 0.0
      %755 = vmatpush.msra.mxu0 0.0
      %756 = vmatpush.msra.mxu0 0.0
      %757 = vmatpush.msra.mxu0 0.0
      %758 = vmatpush.msra.mxu0 0.0
      %759 = vmatpush.msra.mxu0 %v702
      %760 = vmatmul.f32.gmra.mxu0 %v696
      %v761 = vpop.f32.mrf.mxu0
      %v762 = vadd.f32 0.0, %v761
      %763 = vdwg.mxu0
      %764 = vst [vmem:[#allocation1] ss:$2 sm:$0xff] %v405
      %s765 = scalar_lea.vmem [#allocation1], 16
      %766 = vst [vmem:[%s765] ss:$2 sm:$0xff] %v406
      %v767 = vld.sshfl [vmem:[#allocation1] sm:$0xff pattern:$0x75316420]
      %v768 = vld.sshfl [vmem:[#allocation1 + $0x8] sm:$0xff pattern:$0x75316420]
      %v769 = vld.sshfl [vmem:[#allocation1 + $0x10] sm:$0xff pattern:$0x75316420]
      %v770 = vsel %vm415, %v408, 0
      %v772 = vsel %vm418, %v767, 0
      %v774 = vsel %vm418, %v768, 0
      %v776 = vsel %vm418, %v769, 0
      %778 = vmatpush.msra.mxu0 0.0
      %779 = vmatpush.msra.mxu0 0.0
      %780 = vmatpush.msra.mxu0 0.0
      %781 = vmatpush.msra.mxu0 0.0
      %782 = vmatpush.msra.mxu0 0.0
      %783 = vmatpush.msra.mxu0 0.0
      %784 = vmatpush.msra.mxu0 0.0
      %785 = vmatpush.msra.mxu0 0.0
      %786 = vmatpush.msra.mxu0 0.0
      %787 = vmatpush.msra.mxu0 0.0
      %788 = vmatpush.msra.mxu0 0.0
      %789 = vmatpush.msra.mxu0 0.0
      %790 = vmatpush.msra.mxu0 0.0
      %791 = vmatpush.msra.mxu0 0.0
      %792 = vmatpush.msra.mxu0 0.0
      %793 = vmatpush.msra.mxu0 %v772
      %794 = vmatmul.f32.gmra.mxu0 %v770
      %v795 = vpop.f32.mrf.mxu0
      %v796 = vadd.f32 %v722, %v795
      %797 = vdwg.mxu0
      %798 = vmatpush.msra.mxu0 0.0
      %799 = vmatpush.msra.mxu0 0.0
      %800 = vmatpush.msra.mxu0 0.0
      %801 = vmatpush.msra.mxu0 0.0
      %802 = vmatpush.msra.mxu0 0.0
      %803 = vmatpush.msra.mxu0 0.0
      %804 = vmatpush.msra.mxu0 0.0
      %805 = vmatpush.msra.mxu0 0.0
      %806 = vmatpush.msra.mxu0 0.0
      %807 = vmatpush.msra.mxu0 0.0
      %808 = vmatpush.msra.mxu0 0.0
      %809 = vmatpush.msra.mxu0 0.0
      %810 = vmatpush.msra.mxu0 0.0
      %811 = vmatpush.msra.mxu0 0.0
      %812 = vmatpush.msra.mxu0 0.0
      %813 = vmatpush.msra.mxu0 %v774
      %814 = vmatmul.f32.gmra.mxu0 %v770
      %v815 = vpop.f32.mrf.mxu0
      %v816 = vadd.f32 %v742, %v815
      %817 = vdwg.mxu0
      %818 = vmatpush.msra.mxu0 0.0
      %819 = vmatpush.msra.mxu0 0.0
      %820 = vmatpush.msra.mxu0 0.0
      %821 = vmatpush.msra.mxu0 0.0
      %822 = vmatpush.msra.mxu0 0.0
      %823 = vmatpush.msra.mxu0 0.0
      %824 = vmatpush.msra.mxu0 0.0
      %825 = vmatpush.msra.mxu0 0.0
      %826 = vmatpush.msra.mxu0 0.0
      %827 = vmatpush.msra.mxu0 0.0
      %828 = vmatpush.msra.mxu0 0.0
      %829 = vmatpush.msra.mxu0 0.0
      %830 = vmatpush.msra.mxu0 0.0
      %831 = vmatpush.msra.mxu0 0.0
      %832 = vmatpush.msra.mxu0 0.0
      %833 = vmatpush.msra.mxu0 %v776
      %834 = vmatmul.f32.gmra.mxu0 %v770
      %v835 = vpop.f32.mrf.mxu0
      %v836 = vadd.f32 %v762, %v835
      %837 = vdwg.mxu0
      %838 = vrot.lane.b32.xlu0 %v408, 120
      %v839 = vpop.permute.xlu0 %838
      %840 = vst [vmem:[#allocation1] ss:$2 sm:$0xff] %v405
      %s841 = scalar_lea.vmem [#allocation1], 16
      %842 = vst [vmem:[%s841] ss:$2 sm:$0xff] %v406
      %v843 = vld.sshfl [vmem:[#allocation1] sm:$0xff pattern:$0x75316420]
      %v844 = vld.sshfl [vmem:[#allocation1 + $0x8] sm:$0xff pattern:$0x75316420]
      %v845 = vld.sshfl [vmem:[#allocation1 + $0x10] sm:$0xff pattern:$0x75316420]
      %846 = vrot.lane.b32.xlu0 %v843, 126
      %v847 = vpop.permute.xlu0 %846
      %848 = vrot.lane.b32.xlu0 %v844, 126
      %v849 = vpop.permute.xlu0 %848
      %850 = vrot.lane.b32.xlu0 %v845, 126
      %v851 = vpop.permute.xlu0 %850
      %vm852 = vcmask 1031168
      %v853 = vsel %vm852, %v847, %v849
      %v854 = vsel %vm852, %v849, %v851
      %v855 = vsel %vm415, %v839, 0
      %v857 = vsel %vm418, %v853, 0
      %v859 = vsel %vm418, %v854, 0
      %v861 = vsel %vm418, %v851, 0
      %863 = vmatpush.msra.mxu0 0.0
      %864 = vmatpush.msra.mxu0 0.0
      %865 = vmatpush.msra.mxu0 0.0
      %866 = vmatpush.msra.mxu0 0.0
      %867 = vmatpush.msra.mxu0 0.0
      %868 = vmatpush.msra.mxu0 0.0
      %869 = vmatpush.msra.mxu0 0.0
      %870 = vmatpush.msra.mxu0 0.0
      %871 = vmatpush.msra.mxu0 0.0
      %872 = vmatpush.msra.mxu0 0.0
      %873 = vmatpush.msra.mxu0 0.0
      %874 = vmatpush.msra.mxu0 0.0
      %875 = vmatpush.msra.mxu0 0.0
      %876 = vmatpush.msra.mxu0 0.0
      %877 = vmatpush.msra.mxu0 0.0
      %878 = vmatpush.msra.mxu0 %v857
      %879 = vmatmul.f32.gmra.mxu0 %v855
      %v880 = vpop.f32.mrf.mxu0
      %v881 = vadd.f32 0.0, %v880
      %882 = vdwg.mxu0
      %883 = vmatpush.msra.mxu0 0.0
      %884 = vmatpush.msra.mxu0 0.0
      %885 = vmatpush.msra.mxu0 0.0
      %886 = vmatpush.msra.mxu0 0.0
      %887 = vmatpush.msra.mxu0 0.0
      %888 = vmatpush.msra.mxu0 0.0
      %889 = vmatpush.msra.mxu0 0.0
      %890 = vmatpush.msra.mxu0 0.0
      %891 = vmatpush.msra.mxu0 0.0
      %892 = vmatpush.msra.mxu0 0.0
      %893 = vmatpush.msra.mxu0 0.0
      %894 = vmatpush.msra.mxu0 0.0
      %895 = vmatpush.msra.mxu0 0.0
      %896 = vmatpush.msra.mxu0 0.0
      %897 = vmatpush.msra.mxu0 0.0
      %898 = vmatpush.msra.mxu0 %v859
      %899 = vmatmul.f32.gmra.mxu0 %v855
      %v900 = vpop.f32.mrf.mxu0
      %v901 = vadd.f32 0.0, %v900
      %902 = vdwg.mxu0
      %903 = vmatpush.msra.mxu0 0.0
      %904 = vmatpush.msra.mxu0 0.0
      %905 = vmatpush.msra.mxu0 0.0
      %906 = vmatpush.msra.mxu0 0.0
      %907 = vmatpush.msra.mxu0 0.0
      %908 = vmatpush.msra.mxu0 0.0
      %909 = vmatpush.msra.mxu0 0.0
      %910 = vmatpush.msra.mxu0 0.0
      %911 = vmatpush.msra.mxu0 0.0
      %912 = vmatpush.msra.mxu0 0.0
      %913 = vmatpush.msra.mxu0 0.0
      %914 = vmatpush.msra.mxu0 0.0
      %915 = vmatpush.msra.mxu0 0.0
      %916 = vmatpush.msra.mxu0 0.0
      %917 = vmatpush.msra.mxu0 0.0
      %918 = vmatpush.msra.mxu0 %v861
      %919 = vmatmul.f32.gmra.mxu0 %v855
      %v920 = vpop.f32.mrf.mxu0
      %v921 = vadd.f32 0.0, %v920
      %922 = vdwg.mxu0
      %v923 = vadd.f32 %v796, %v881
      %v924 = vadd.f32 %v816, %v901
      %v925 = vadd.f32 %v836, %v921
      %926 = vrot.lane.b32.xlu0 %v408, 116
      %v927 = vpop.permute.xlu0 %926
      %928 = vst [vmem:[#allocation1] ss:$2 sm:$0xff] %v405
      %s929 = scalar_lea.vmem [#allocation1], 16
      %930 = vst [vmem:[%s929] ss:$2 sm:$0xff] %v406
      %v931 = vld.sshfl [vmem:[#allocation1] sm:$0xff pattern:$0x75316420]
      %v932 = vld.sshfl [vmem:[#allocation1 + $0x8] sm:$0xff pattern:$0x75316420]
      %v933 = vld.sshfl [vmem:[#allocation1 + $0x10] sm:$0xff pattern:$0x75316420]
      %934 = vrot.lane.b32.xlu0 %v931, 110
      %v935 = vpop.permute.xlu0 %934
      %936 = vrot.lane.b32.xlu0 %v932, 110
      %v937 = vpop.permute.xlu0 %936
      %938 = vrot.lane.b32.xlu0 %v933, 110
      %v939 = vpop.permute.xlu0 %938
      %vm940 = vcmask 900096
      %v941 = vsel %vm940, %v935, %v937
      %v942 = vsel %vm940, %v937, %v939
      %v943 = vsel %vm415, %v927, 0
      %v945 = vsel %vm418, %v941, 0
      %v947 = vsel %vm418, %v942, 0
      %v949 = vsel %vm418, %v939, 0
      %951 = vmatpush.msra.mxu0 0.0
      %952 = vmatpush.msra.mxu0 0.0
      %953 = vmatpush.msra.mxu0 0.0
      %954 = vmatpush.msra.mxu0 0.0
      %955 = vmatpush.msra.mxu0 0.0
      %956 = vmatpush.msra.mxu0 0.0
      %957 = vmatpush.msra.mxu0 0.0
      %958 = vmatpush.msra.mxu0 0.0
      %959 = vmatpush.msra.mxu0 0.0
      %960 = vmatpush.msra.mxu0 0.0
      %961 = vmatpush.msra.mxu0 0.0
      %962 = vmatpush.msra.mxu0 0.0
      %963 = vmatpush.msra.mxu0 0.0
      %964 = vmatpush.msra.mxu0 0.0
      %965 = vmatpush.msra.mxu0 0.0
      %966 = vmatpush.msra.mxu0 %v945
      %967 = vmatmul.f32.gmra.mxu0 %v943
      %v968 = vpop.f32.mrf.mxu0
      %v969 = vadd.f32 0.0, %v968
      %970 = vdwg.mxu0
      %971 = vmatpush.msra.mxu0 0.0
      %972 = vmatpush.msra.mxu0 0.0
      %973 = vmatpush.msra.mxu0 0.0
      %974 = vmatpush.msra.mxu0 0.0
      %975 = vmatpush.msra.mxu0 0.0
      %976 = vmatpush.msra.mxu0 0.0
      %977 = vmatpush.msra.mxu0 0.0
      %978 = vmatpush.msra.mxu0 0.0
      %979 = vmatpush.msra.mxu0 0.0
      %980 = vmatpush.msra.mxu0 0.0
      %981 = vmatpush.msra.mxu0 0.0
      %982 = vmatpush.msra.mxu0 0.0
      %983 = vmatpush.msra.mxu0 0.0
      %984 = vmatpush.msra.mxu0 0.0
      %985 = vmatpush.msra.mxu0 0.0
      %986 = vmatpush.msra.mxu0 %v947
      %987 = vmatmul.f32.gmra.mxu0 %v943
      %v988 = vpop.f32.mrf.mxu0
      %v989 = vadd.f32 0.0, %v988
      %990 = vdwg.mxu0
      %991 = vmatpush.msra.mxu0 0.0
      %992 = vmatpush.msra.mxu0 0.0
      %993 = vmatpush.msra.mxu0 0.0
      %994 = vmatpush.msra.mxu0 0.0
      %995 = vmatpush.msra.mxu0 0.0
      %996 = vmatpush.msra.mxu0 0.0
      %997 = vmatpush.msra.mxu0 0.0
      %998 = vmatpush.msra.mxu0 0.0
      %999 = vmatpush.msra.mxu0 0.0
      %1000 = vmatpush.msra.mxu0 0.0
      %1001 = vmatpush.msra.mxu0 0.0
      %1002 = vmatpush.msra.mxu0 0.0
      %1003 = vmatpush.msra.mxu0 0.0
      %1004 = vmatpush.msra.mxu0 0.0
      %1005 = vmatpush.msra.mxu0 0.0
      %1006 = vmatpush.msra.mxu0 %v949
      %1007 = vmatmul.f32.gmra.mxu0 %v943
      %v1008 = vpop.f32.mrf.mxu0
      %v1009 = vadd.f32 0.0, %v1008
      %1010 = vdwg.mxu0
      %v1011 = vadd.f32 %v923, %v969
      %v1012 = vadd.f32 %v924, %v989
      %v1013 = vadd.f32 %v925, %v1009
      %1014 = vrot.lane.b32.xlu0 %v408, 112
      %v1015 = vpop.permute.xlu0 %1014
      %1016 = vst [vmem:[#allocation1] ss:$2 sm:$0xff] %v405
      %s1017 = scalar_lea.vmem [#allocation1], 16
      %1018 = vst [vmem:[%s1017] ss:$2 sm:$0xff] %v406
      %v1019 = vld.sshfl [vmem:[#allocation1] sm:$0xff pattern:$0x75316420]
      %v1020 = vld.sshfl [vmem:[#allocation1 + $0x8] sm:$0xff pattern:$0x75316420]
      %v1021 = vld.sshfl [vmem:[#allocation1 + $0x10] sm:$0xff pattern:$0x75316420]
      %1022 = vrot.lane.b32.xlu0 %v1019, 109
      %v1023 = vpop.permute.xlu0 %1022
      %1024 = vrot.lane.b32.xlu0 %v1020, 109
      %v1025 = vpop.permute.xlu0 %1024
      %1026 = vrot.lane.b32.xlu0 %v1021, 109
      %v1027 = vpop.permute.xlu0 %1026
      %vm1028 = vcmask 891904
      %v1029 = vsel %vm1028, %v1023, %v1025
      %v1030 = vsel %vm1028, %v1025, %v1027
      %v1031 = vsel %vm415, %v1015, 0
      %v1033 = vsel %vm418, %v1029, 0
      %v1035 = vsel %vm418, %v1030, 0
      %v1037 = vsel %vm418, %v1027, 0
      %1039 = vmatpush.msra.mxu0 0.0
      %1040 = vmatpush.msra.mxu0 0.0
      %1041 = vmatpush.msra.mxu0 0.0
      %1042 = vmatpush.msra.mxu0 0.0
      %1043 = vmatpush.msra.mxu0 0.0
      %1044 = vmatpush.msra.mxu0 0.0
      %1045 = vmatpush.msra.mxu0 0.0
      %1046 = vmatpush.msra.mxu0 0.0
      %1047 = vmatpush.msra.mxu0 0.0
      %1048 = vmatpush.msra.mxu0 0.0
      %1049 = vmatpush.msra.mxu0 0.0
      %1050 = vmatpush.msra.mxu0 0.0
      %1051 = vmatpush.msra.mxu0 0.0
      %1052 = vmatpush.msra.mxu0 0.0
      %1053 = vmatpush.msra.mxu0 0.0
      %1054 = vmatpush.msra.mxu0 %v1033
      %1055 = vmatmul.f32.gmra.mxu0 %v1031
      %v1056 = vpop.f32.mrf.mxu0
      %v1057 = vadd.f32 0.0, %v1056
      %1058 = vdwg.mxu0
      %1059 = vmatpush.msra.mxu0 0.0
      %1060 = vmatpush.msra.mxu0 0.0
      %1061 = vmatpush.msra.mxu0 0.0
      %1062 = vmatpush.msra.mxu0 0.0
      %1063 = vmatpush.msra.mxu0 0.0
      %1064 = vmatpush.msra.mxu0 0.0
      %1065 = vmatpush.msra.mxu0 0.0
      %1066 = vmatpush.msra.mxu0 0.0
      %1067 = vmatpush.msra.mxu0 0.0
      %1068 = vmatpush.msra.mxu0 0.0
      %1069 = vmatpush.msra.mxu0 0.0
      %1070 = vmatpush.msra.mxu0 0.0
      %1071 = vmatpush.msra.mxu0 0.0
      %1072 = vmatpush.msra.mxu0 0.0
      %1073 = vmatpush.msra.mxu0 0.0
      %1074 = vmatpush.msra.mxu0 %v1035
      %1075 = vmatmul.f32.gmra.mxu0 %v1031
      %v1076 = vpop.f32.mrf.mxu0
      %v1077 = vadd.f32 0.0, %v1076
      %1078 = vdwg.mxu0
      %1079 = vmatpush.msra.mxu0 0.0
      %1080 = vmatpush.msra.mxu0 0.0
      %1081 = vmatpush.msra.mxu0 0.0
      %1082 = vmatpush.msra.mxu0 0.0
      %1083 = vmatpush.msra.mxu0 0.0
      %1084 = vmatpush.msra.mxu0 0.0
      %1085 = vmatpush.msra.mxu0 0.0
      %1086 = vmatpush.msra.mxu0 0.0
      %1087 = vmatpush.msra.mxu0 0.0
      %1088 = vmatpush.msra.mxu0 0.0
      %1089 = vmatpush.msra.mxu0 0.0
      %1090 = vmatpush.msra.mxu0 0.0
      %1091 = vmatpush.msra.mxu0 0.0
      %1092 = vmatpush.msra.mxu0 0.0
      %1093 = vmatpush.msra.mxu0 0.0
      %1094 = vmatpush.msra.mxu0 %v1037
      %1095 = vmatmul.f32.gmra.mxu0 %v1031
      %v1096 = vpop.f32.mrf.mxu0
      %v1097 = vadd.f32 0.0, %v1096
      %1098 = vdwg.mxu0
      %v1099 = vadd.f32 %v1011, %v1057
      %v1100 = vadd.f32 %v1012, %v1077
      %v1101 = vadd.f32 %v1013, %v1097
      %1102 = vrot.lane.b32.xlu0 %v408, 108
      %v1103 = vpop.permute.xlu0 %1102
      %1104 = vst [vmem:[#allocation1] ss:$2 sm:$0xff] %v405
      %s1105 = scalar_lea.vmem [#allocation1], 16
      %1106 = vst [vmem:[%s1105] ss:$2 sm:$0xff] %v406
      %v1107 = vld.sshfl [vmem:[#allocation1] sm:$0xff pattern:$0x75316420]
      %v1108 = vld.sshfl [vmem:[#allocation1 + $0x8] sm:$0xff pattern:$0x75316420]
      %v1109 = vld.sshfl [vmem:[#allocation1 + $0x10] sm:$0xff pattern:$0x75316420]
      %1110 = vrot.lane.b32.xlu0 %v1107, 108
      %v1111 = vpop.permute.xlu0 %1110
      %1112 = vrot.lane.b32.xlu0 %v1108, 108
      %v1113 = vpop.permute.xlu0 %1112
      %1114 = vrot.lane.b32.xlu0 %v1109, 108
      %v1115 = vpop.permute.xlu0 %1114
      %vm1116 = vcmask 883712
      %v1117 = vsel %vm1116, %v1111, %v1113
      %v1118 = vsel %vm1116, %v1113, %v1115
      %v1119 = vsel %vm415, %v1103, 0
      %v1121 = vsel %vm418, %v1117, 0
      %v1123 = vsel %vm418, %v1118, 0
      %v1125 = vsel %vm418, %v1115, 0
      %1127 = vmatpush.msra.mxu0 0.0
      %1128 = vmatpush.msra.mxu0 0.0
      %1129 = vmatpush.msra.mxu0 0.0
      %1130 = vmatpush.msra.mxu0 0.0
      %1131 = vmatpush.msra.mxu0 0.0
      %1132 = vmatpush.msra.mxu0 0.0
      %1133 = vmatpush.msra.mxu0 0.0
      %1134 = vmatpush.msra.mxu0 0.0
      %1135 = vmatpush.msra.mxu0 0.0
      %1136 = vmatpush.msra.mxu0 0.0
      %1137 = vmatpush.msra.mxu0 0.0
      %1138 = vmatpush.msra.mxu0 0.0
      %1139 = vmatpush.msra.mxu0 0.0
      %1140 = vmatpush.msra.mxu0 0.0
      %1141 = vmatpush.msra.mxu0 0.0
      %1142 = vmatpush.msra.mxu0 %v1121
      %1143 = vmatmul.f32.gmra.mxu0 %v1119
      %v1144 = vpop.f32.mrf.mxu0
      %v1145 = vadd.f32 0.0, %v1144
      %1146 = vdwg.mxu0
      %1147 = vmatpush.msra.mxu0 0.0
      %1148 = vmatpush.msra.mxu0 0.0
      %1149 = vmatpush.msra.mxu0 0.0
      %1150 = vmatpush.msra.mxu0 0.0
      %1151 = vmatpush.msra.mxu0 0.0
      %1152 = vmatpush.msra.mxu0 0.0
      %1153 = vmatpush.msra.mxu0 0.0
      %1154 = vmatpush.msra.mxu0 0.0
      %1155 = vmatpush.msra.mxu0 0.0
      %1156 = vmatpush.msra.mxu0 0.0
      %1157 = vmatpush.msra.mxu0 0.0
      %1158 = vmatpush.msra.mxu0 0.0
      %1159 = vmatpush.msra.mxu0 0.0
      %1160 = vmatpush.msra.mxu0 0.0
      %1161 = vmatpush.msra.mxu0 0.0
      %1162 = vmatpush.msra.mxu0 %v1123
      %1163 = vmatmul.f32.gmra.mxu0 %v1119
      %v1164 = vpop.f32.mrf.mxu0
      %v1165 = vadd.f32 0.0, %v1164
      %1166 = vdwg.mxu0
      %1167 = vmatpush.msra.mxu0 0.0
      %1168 = vmatpush.msra.mxu0 0.0
      %1169 = vmatpush.msra.mxu0 0.0
      %1170 = vmatpush.msra.mxu0 0.0
      %1171 = vmatpush.msra.mxu0 0.0
      %1172 = vmatpush.msra.mxu0 0.0
      %1173 = vmatpush.msra.mxu0 0.0
      %1174 = vmatpush.msra.mxu0 0.0
      %1175 = vmatpush.msra.mxu0 0.0
      %1176 = vmatpush.msra.mxu0 0.0
      %1177 = vmatpush.msra.mxu0 0.0
      %1178 = vmatpush.msra.mxu0 0.0
      %1179 = vmatpush.msra.mxu0 0.0
      %1180 = vmatpush.msra.mxu0 0.0
      %1181 = vmatpush.msra.mxu0 0.0
      %1182 = vmatpush.msra.mxu0 %v1125
      %1183 = vmatmul.f32.gmra.mxu0 %v1119
      %v1184 = vpop.f32.mrf.mxu0
      %v1185 = vadd.f32 0.0, %v1184
      %1186 = vdwg.mxu0
      %v1187 = vadd.f32 %v1099, %v1145
      %v1188 = vadd.f32 %v1100, %v1165
      %v1189 = vadd.f32 %v1101, %v1185
      %1190 = vrot.lane.b32.xlu0 %v408, 104
      %v1191 = vpop.permute.xlu0 %1190
      %1192 = vst [vmem:[#allocation1] ss:$2 sm:$0xff] %v405
      %s1193 = scalar_lea.vmem [#allocation1], 16
      %1194 = vst [vmem:[%s1193] ss:$2 sm:$0xff] %v406
      %v1195 = vld.sshfl [vmem:[#allocation1] sm:$0xff pattern:$0x75316420]
      %v1196 = vld.sshfl [vmem:[#allocation1 + $0x8] sm:$0xff pattern:$0x75316420]
      %v1197 = vld.sshfl [vmem:[#allocation1 + $0x10] sm:$0xff pattern:$0x75316420]
      %1198 = vrot.lane.b32.xlu0 %v1195, 92
      %v1199 = vpop.permute.xlu0 %1198
      %1200 = vrot.lane.b32.xlu0 %v1196, 92
      %v1201 = vpop.permute.xlu0 %1200
      %1202 = vrot.lane.b32.xlu0 %v1197, 92
      %v1203 = vpop.permute.xlu0 %1202
      %vm1204 = vcmask 752640
      %v1205 = vsel %vm1204, %v1199, %v1201
      %v1206 = vsel %vm1204, %v1201, %v1203
      %v1207 = vsel %vm415, %v1191, 0
      %v1209 = vsel %vm418, %v1205, 0
      %v1211 = vsel %vm418, %v1206, 0
      %v1213 = vsel %vm418, %v1203, 0
      %1215 = vmatpush.msra.mxu0 0.0
      %1216 = vmatpush.msra.mxu0 0.0
      %1217 = vmatpush.msra.mxu0 0.0
      %1218 = vmatpush.msra.mxu0 0.0
      %1219 = vmatpush.msra.mxu0 0.0
      %1220 = vmatpush.msra.mxu0 0.0
      %1221 = vmatpush.msra.mxu0 0.0
      %1222 = vmatpush.msra.mxu0 0.0
      %1223 = vmatpush.msra.mxu0 0.0
      %1224 = vmatpush.msra.mxu0 0.0
      %1225 = vmatpush.msra.mxu0 0.0
      %1226 = vmatpush.msra.mxu0 0.0
      %1227 = vmatpush.msra.mxu0 0.0
      %1228 = vmatpush.msra.mxu0 0.0
      %1229 = vmatpush.msra.mxu0 0.0
      %1230 = vmatpush.msra.mxu0 %v1209
      %1231 = vmatmul.f32.gmra.mxu0 %v1207
      %v1232 = vpop.f32.mrf.mxu0
      %v1233 = vadd.f32 0.0, %v1232
      %1234 = vdwg.mxu0
      %1235 = vmatpush.msra.mxu0 0.0
      %1236 = vmatpush.msra.mxu0 0.0
      %1237 = vmatpush.msra.mxu0 0.0
      %1238 = vmatpush.msra.mxu0 0.0
      %1239 = vmatpush.msra.mxu0 0.0
      %1240 = vmatpush.msra.mxu0 0.0
      %1241 = vmatpush.msra.mxu0 0.0
      %1242 = vmatpush.msra.mxu0 0.0
      %1243 = vmatpush.msra.mxu0 0.0
      %1244 = vmatpush.msra.mxu0 0.0
      %1245 = vmatpush.msra.mxu0 0.0
      %1246 = vmatpush.msra.mxu0 0.0
      %1247 = vmatpush.msra.mxu0 0.0
      %1248 = vmatpush.msra.mxu0 0.0
      %1249 = vmatpush.msra.mxu0 0.0
      %1250 = vmatpush.msra.mxu0 %v1211
      %1251 = vmatmul.f32.gmra.mxu0 %v1207
      %v1252 = vpop.f32.mrf.mxu0
      %v1253 = vadd.f32 0.0, %v1252
      %1254 = vdwg.mxu0
      %1255 = vmatpush.msra.mxu0 0.0
      %1256 = vmatpush.msra.mxu0 0.0
      %1257 = vmatpush.msra.mxu0 0.0
      %1258 = vmatpush.msra.mxu0 0.0
      %1259 = vmatpush.msra.mxu0 0.0
      %1260 = vmatpush.msra.mxu0 0.0
      %1261 = vmatpush.msra.mxu0 0.0
      %1262 = vmatpush.msra.mxu0 0.0
      %1263 = vmatpush.msra.mxu0 0.0
      %1264 = vmatpush.msra.mxu0 0.0
      %1265 = vmatpush.msra.mxu0 0.0
      %1266 = vmatpush.msra.mxu0 0.0
      %1267 = vmatpush.msra.mxu0 0.0
      %1268 = vmatpush.msra.mxu0 0.0
      %1269 = vmatpush.msra.mxu0 0.0
      %1270 = vmatpush.msra.mxu0 %v1213
      %1271 = vmatmul.f32.gmra.mxu0 %v1207
      %v1272 = vpop.f32.mrf.mxu0
      %v1273 = vadd.f32 0.0, %v1272
      %1274 = vdwg.mxu0
      %v1275 = vadd.f32 %v1187, %v1233
      %v1276 = vadd.f32 %v1188, %v1253
      %v1277 = vadd.f32 %v1189, %v1273
      %1278 = vrot.lane.b32.xlu0 %v408, 100
      %v1279 = vpop.permute.xlu0 %1278
      %1280 = vst [vmem:[#allocation1] ss:$2 sm:$0xff] %v405
      %s1281 = scalar_lea.vmem [#allocation1], 16
      %1282 = vst [vmem:[%s1281] ss:$2 sm:$0xff] %v406
      %v1283 = vld.sshfl [vmem:[#allocation1] sm:$0xff pattern:$0x75316420]
      %v1284 = vld.sshfl [vmem:[#allocation1 + $0x8] sm:$0xff pattern:$0x75316420]
      %v1285 = vld.sshfl [vmem:[#allocation1 + $0x10] sm:$0xff pattern:$0x75316420]
      %1286 = vrot.lane.b32.xlu0 %v1283, 91
      %v1287 = vpop.permute.xlu0 %1286
      %1288 = vrot.lane.b32.xlu0 %v1284, 91
      %v1289 = vpop.permute.xlu0 %1288
      %1290 = vrot.lane.b32.xlu0 %v1285, 91
      %v1291 = vpop.permute.xlu0 %1290
      %vm1292 = vcmask 744448
      %v1293 = vsel %vm1292, %v1287, %v1289
      %v1294 = vsel %vm1292, %v1289, %v1291
      %v1295 = vsel %vm415, %v1279, 0
      %v1297 = vsel %vm418, %v1293, 0
      %v1299 = vsel %vm418, %v1294, 0
      %v1301 = vsel %vm418, %v1291, 0
      %1303 = vmatpush.msra.mxu0 0.0
      %1304 = vmatpush.msra.mxu0 0.0
      %1305 = vmatpush.msra.mxu0 0.0
      %1306 = vmatpush.msra.mxu0 0.0
      %1307 = vmatpush.msra.mxu0 0.0
      %1308 = vmatpush.msra.mxu0 0.0
      %1309 = vmatpush.msra.mxu0 0.0
      %1310 = vmatpush.msra.mxu0 0.0
      %1311 = vmatpush.msra.mxu0 0.0
      %1312 = vmatpush.msra.mxu0 0.0
      %1313 = vmatpush.msra.mxu0 0.0
      %1314 = vmatpush.msra.mxu0 0.0
      %1315 = vmatpush.msra.mxu0 0.0
      %1316 = vmatpush.msra.mxu0 0.0
      %1317 = vmatpush.msra.mxu0 0.0
      %1318 = vmatpush.msra.mxu0 %v1297
      %1319 = vmatmul.f32.gmra.mxu0 %v1295
      %v1320 = vpop.f32.mrf.mxu0
      %v1321 = vadd.f32 0.0, %v1320
      %1322 = vdwg.mxu0
      %1323 = vmatpush.msra.mxu0 0.0
      %1324 = vmatpush.msra.mxu0 0.0
      %1325 = vmatpush.msra.mxu0 0.0
      %1326 = vmatpush.msra.mxu0 0.0
      %1327 = vmatpush.msra.mxu0 0.0
      %1328 = vmatpush.msra.mxu0 0.0
      %1329 = vmatpush.msra.mxu0 0.0
      %1330 = vmatpush.msra.mxu0 0.0
      %1331 = vmatpush.msra.mxu0 0.0
      %1332 = vmatpush.msra.mxu0 0.0
      %1333 = vmatpush.msra.mxu0 0.0
      %1334 = vmatpush.msra.mxu0 0.0
      %1335 = vmatpush.msra.mxu0 0.0
      %1336 = vmatpush.msra.mxu0 0.0
      %1337 = vmatpush.msra.mxu0 0.0
      %1338 = vmatpush.msra.mxu0 %v1299
      %1339 = vmatmul.f32.gmra.mxu0 %v1295
      %v1340 = vpop.f32.mrf.mxu0
      %v1341 = vadd.f32 0.0, %v1340
      %1342 = vdwg.mxu0
      %1343 = vmatpush.msra.mxu0 0.0
      %1344 = vmatpush.msra.mxu0 0.0
      %1345 = vmatpush.msra.mxu0 0.0
      %1346 = vmatpush.msra.mxu0 0.0
      %1347 = vmatpush.msra.mxu0 0.0
      %1348 = vmatpush.msra.mxu0 0.0
      %1349 = vmatpush.msra.mxu0 0.0
      %1350 = vmatpush.msra.mxu0 0.0
      %1351 = vmatpush.msra.mxu0 0.0
      %1352 = vmatpush.msra.mxu0 0.0
      %1353 = vmatpush.msra.mxu0 0.0
      %1354 = vmatpush.msra.mxu0 0.0
      %1355 = vmatpush.msra.mxu0 0.0
      %1356 = vmatpush.msra.mxu0 0.0
      %1357 = vmatpush.msra.mxu0 0.0
      %1358 = vmatpush.msra.mxu0 %v1301
      %1359 = vmatmul.f32.gmra.mxu0 %v1295
      %v1360 = vpop.f32.mrf.mxu0
      %v1361 = vadd.f32 0.0, %v1360
      %1362 = vdwg.mxu0
      %v1363 = vadd.f32 %v1275, %v1321
      %v1364 = vadd.f32 %v1276, %v1341
      %v1365 = vadd.f32 %v1277, %v1361
      %1366 = vrot.lane.b32.xlu0 %v408, 96
      %v1367 = vpop.permute.xlu0 %1366
      %1368 = vst [vmem:[#allocation1] ss:$2 sm:$0xff] %v405
      %s1369 = scalar_lea.vmem [#allocation1], 16
      %1370 = vst [vmem:[%s1369] ss:$2 sm:$0xff] %v406
      %v1371 = vld.sshfl [vmem:[#allocation1] sm:$0xff pattern:$0x75316420]
      %v1372 = vld.sshfl [vmem:[#allocation1 + $0x8] sm:$0xff pattern:$0x75316420]
      %v1373 = vld.sshfl [vmem:[#allocation1 + $0x10] sm:$0xff pattern:$0x75316420]
      %1374 = vrot.lane.b32.xlu0 %v1371, 90
      %v1375 = vpop.permute.xlu0 %1374
      %1376 = vrot.lane.b32.xlu0 %v1372, 90
      %v1377 = vpop.permute.xlu0 %1376
      %1378 = vrot.lane.b32.xlu0 %v1373, 90
      %v1379 = vpop.permute.xlu0 %1378
      %vm1380 = vcmask 736256
      %v1381 = vsel %vm1380, %v1375, %v1377
      %v1382 = vsel %vm1380, %v1377, %v1379
      %v1383 = vsel %vm415, %v1367, 0
      %v1385 = vsel %vm418, %v1381, 0
      %v1387 = vsel %vm418, %v1382, 0
      %v1389 = vsel %vm418, %v1379, 0
      %1391 = vmatpush.msra.mxu0 0.0
      %1392 = vmatpush.msra.mxu0 0.0
      %1393 = vmatpush.msra.mxu0 0.0
      %1394 = vmatpush.msra.mxu0 0.0
      %1395 = vmatpush.msra.mxu0 0.0
      %1396 = vmatpush.msra.mxu0 0.0
      %1397 = vmatpush.msra.mxu0 0.0
      %1398 = vmatpush.msra.mxu0 0.0
      %1399 = vmatpush.msra.mxu0 0.0
      %1400 = vmatpush.msra.mxu0 0.0
      %1401 = vmatpush.msra.mxu0 0.0
      %1402 = vmatpush.msra.mxu0 0.0
      %1403 = vmatpush.msra.mxu0 0.0
      %1404 = vmatpush.msra.mxu0 0.0
      %1405 = vmatpush.msra.mxu0 0.0
      %1406 = vmatpush.msra.mxu0 %v1385
      %1407 = vmatmul.f32.gmra.mxu0 %v1383
      %v1408 = vpop.f32.mrf.mxu0
      %v1409 = vadd.f32 0.0, %v1408
      %1410 = vdwg.mxu0
      %1411 = vmatpush.msra.mxu0 0.0
      %1412 = vmatpush.msra.mxu0 0.0
      %1413 = vmatpush.msra.mxu0 0.0
      %1414 = vmatpush.msra.mxu0 0.0
      %1415 = vmatpush.msra.mxu0 0.0
      %1416 = vmatpush.msra.mxu0 0.0
      %1417 = vmatpush.msra.mxu0 0.0
      %1418 = vmatpush.msra.mxu0 0.0
      %1419 = vmatpush.msra.mxu0 0.0
      %1420 = vmatpush.msra.mxu0 0.0
      %1421 = vmatpush.msra.mxu0 0.0
      %1422 = vmatpush.msra.mxu0 0.0
      %1423 = vmatpush.msra.mxu0 0.0
      %1424 = vmatpush.msra.mxu0 0.0
      %1425 = vmatpush.msra.mxu0 0.0
      %1426 = vmatpush.msra.mxu0 %v1387
      %1427 = vmatmul.f32.gmra.mxu0 %v1383
      %v1428 = vpop.f32.mrf.mxu0
      %v1429 = vadd.f32 0.0, %v1428
      %1430 = vdwg.mxu0
      %1431 = vmatpush.msra.mxu0 0.0
      %1432 = vmatpush.msra.mxu0 0.0
      %1433 = vmatpush.msra.mxu0 0.0
      %1434 = vmatpush.msra.mxu0 0.0
      %1435 = vmatpush.msra.mxu0 0.0
      %1436 = vmatpush.msra.mxu0 0.0
      %1437 = vmatpush.msra.mxu0 0.0
      %1438 = vmatpush.msra.mxu0 0.0
      %1439 = vmatpush.msra.mxu0 0.0
      %1440 = vmatpush.msra.mxu0 0.0
      %1441 = vmatpush.msra.mxu0 0.0
      %1442 = vmatpush.msra.mxu0 0.0
      %1443 = vmatpush.msra.mxu0 0.0
      %1444 = vmatpush.msra.mxu0 0.0
      %1445 = vmatpush.msra.mxu0 0.0
      %1446 = vmatpush.msra.mxu0 %v1389
      %1447 = vmatmul.f32.gmra.mxu0 %v1383
      %v1448 = vpop.f32.mrf.mxu0
      %v1449 = vadd.f32 0.0, %v1448
      %1450 = vdwg.mxu0
      %v1451 = vadd.f32 %v1363, %v1409
      %v1452 = vadd.f32 %v1364, %v1429
      %v1453 = vadd.f32 %v1365, %v1449
      %v1454 = vld [vmem:[%s6] sm:$0xff]
      %1456 = vset.pattern.permute.xlu0 0
      %1457 = vperm.xlu0 %1456, %v1454
      %v1458 = vpop.permute.xlu0 %1457
      %v1460 = vadd.f32 %v1451, %v1458
      %v1461 = vadd.f32 %v1452, %v1458
      %v1462 = vadd.f32 %v1453, %v1458
      %v1463 = vmax.f32 %v1460, 0.0
      %v1464 = vmax.f32 %v1461, 0.0
      %v1465 = vmax.f32 %v1462, 0.0
      %v1466 = vld [vmem:[%s2] sm:$0x7]
      %v1468 = vperm.slane %v1466, 0
      %v1469 = vperm.slane %v1466, 1
      %v1470 = vperm.slane %v1466, 2
      %v1474 = vmul.f32 %v1463, %v1468
      %v1475 = vmul.f32 %v1464, %v1469
      %v1476 = vmul.f32 %v1465, %v1470
      %1478 = vset.pattern.permute.xlu0 0
      %1479 = vperm.xlu0 %1478, %v675
      %v1480 = vpop.permute.xlu0 %1479
      %v1482 = vmul.f32 %v1474, %v1480
      %v1483 = vmul.f32 %v1475, %v1480
      %v1484 = vadd.f32 %v1482, 0.0
      %v1485 = vadd.f32 %v1483, 0.0
      %1486 = vset.pattern.permute.xlu0 1
      %1487 = vperm.xlu0 %1486, %v675
      %v1488 = vpop.permute.xlu0 %1487
      %v1490 = vmul.f32 %v1474, %v1488
      %v1491 = vmul.f32 %v1475, %v1488
      %1494 = vrot.lane.b32.xlu0 %v1490, 127
      %v1495 = vpop.permute.xlu0 %1494
      %1496 = vrot.lane.b32.xlu0 %v1491, 127
      %v1497 = vpop.permute.xlu0 %1496
      %v1498 = vsel %vm693, %v1495, %v1497
      %v1501 = vadd.f32 %v1484, %v1498
      %v1502 = vadd.f32 %v1485, %v1497
      %1503 = vset.pattern.permute.xlu0 2
      %1504 = vperm.xlu0 %1503, %v675
      %v1505 = vpop.permute.xlu0 %1504
      %v1507 = vmul.f32 %v1474, %v1505
      %v1508 = vmul.f32 %v1475, %v1505
      %1511 = vrot.lane.b32.xlu0 %v1507, 126
      %v1512 = vpop.permute.xlu0 %1511
      %1513 = vrot.lane.b32.xlu0 %v1508, 126
      %v1514 = vpop.permute.xlu0 %1513
      %v1515 = vsel %vm852, %v1512, %v1514
      %v1518 = vadd.f32 %v1501, %v1515
      %v1519 = vadd.f32 %v1502, %v1514
      %1520 = vset.pattern.permute.xlu0 3
      %1521 = vperm.xlu0 %1520, %v675
      %v1522 = vpop.permute.xlu0 %1521
      %v1524 = vmul.f32 %v1474, %v1522
      %v1525 = vmul.f32 %v1475, %v1522
      %1528 = vrot.lane.b32.xlu0 %v1524, 125
      %v1529 = vpop.permute.xlu0 %1528
      %1530 = vrot.lane.b32.xlu0 %v1525, 125
      %v1531 = vpop.permute.xlu0 %1530
      %vm1532 = vcmask 1022976
      %v1533 = vsel %vm1532, %v1529, %v1531
      %v1536 = vadd.f32 %v1518, %v1533
      %v1537 = vadd.f32 %v1519, %v1531
      %1538 = vset.pattern.permute.xlu0 4
      %1539 = vperm.xlu0 %1538, %v675
      %v1540 = vpop.permute.xlu0 %1539
      %v1542 = vmul.f32 %v1474, %v1540
      %v1543 = vmul.f32 %v1475, %v1540
      %1546 = vrot.lane.b32.xlu0 %v1542, 124
      %v1547 = vpop.permute.xlu0 %1546
      %1548 = vrot.lane.b32.xlu0 %v1543, 124
      %v1549 = vpop.permute.xlu0 %1548
      %vm1550 = vcmask 1014784
      %v1551 = vsel %vm1550, %v1547, %v1549
      %v1554 = vadd.f32 %v1536, %v1551
      %v1555 = vadd.f32 %v1537, %v1549
      %1556 = vset.pattern.permute.xlu0 7
      %1557 = vperm.xlu0 %1556, %v675
      %v1558 = vpop.permute.xlu0 %1557
      %v1560 = vmul.f32 %v1474, %v1558
      %v1561 = vmul.f32 %v1475, %v1558
      %v1562 = vmul.f32 %v1476, %v1558
      %1566 = vrot.lane.b32.xlu0 %v1560, 110
      %v1567 = vpop.permute.xlu0 %1566
      %1568 = vrot.lane.b32.xlu0 %v1561, 110
      %v1569 = vpop.permute.xlu0 %1568
      %1570 = vrot.lane.b32.xlu0 %v1562, 110
      %v1571 = vpop.permute.xlu0 %1570
      %v1572 = vsel %vm940, %v1567, %v1569
      %v1573 = vsel %vm940, %v1569, %v1571
      %v1576 = vadd.f32 %v1554, %v1572
      %v1577 = vadd.f32 %v1555, %v1573
      %1578 = vset.pattern.permute.xlu0 8
      %1579 = vperm.xlu0 %1578, %v675
      %v1580 = vpop.permute.xlu0 %1579
      %v1582 = vmul.f32 %v1474, %v1580
      %v1583 = vmul.f32 %v1475, %v1580
      %v1584 = vmul.f32 %v1476, %v1580
      %1588 = vrot.lane.b32.xlu0 %v1582, 109
      %v1589 = vpop.permute.xlu0 %1588
      %1590 = vrot.lane.b32.xlu0 %v1583, 109
      %v1591 = vpop.permute.xlu0 %1590
      %1592 = vrot.lane.b32.xlu0 %v1584, 109
      %v1593 = vpop.permute.xlu0 %1592
      %v1594 = vsel %vm1028, %v1589, %v1591
      %v1595 = vsel %vm1028, %v1591, %v1593
      %v1598 = vadd.f32 %v1576, %v1594
      %v1599 = vadd.f32 %v1577, %v1595
      %1600 = vset.pattern.permute.xlu0 9
      %1601 = vperm.xlu0 %1600, %v675
      %v1602 = vpop.permute.xlu0 %1601
      %v1604 = vmul.f32 %v1474, %v1602
      %v1605 = vmul.f32 %v1475, %v1602
      %v1606 = vmul.f32 %v1476, %v1602
      %1610 = vrot.lane.b32.xlu0 %v1604, 108
      %v1611 = vpop.permute.xlu0 %1610
      %1612 = vrot.lane.b32.xlu0 %v1605, 108
      %v1613 = vpop.permute.xlu0 %1612
      %1614 = vrot.lane.b32.xlu0 %v1606, 108
      %v1615 = vpop.permute.xlu0 %1614
      %v1616 = vsel %vm1116, %v1611, %v1613
      %v1617 = vsel %vm1116, %v1613, %v1615
      %v1620 = vadd.f32 %v1598, %v1616
      %v1621 = vadd.f32 %v1599, %v1617
      %1622 = vset.pattern.permute.xlu0 10
      %1623 = vperm.xlu0 %1622, %v675
      %v1624 = vpop.permute.xlu0 %1623
      %v1626 = vmul.f32 %v1474, %v1624
      %v1627 = vmul.f32 %v1475, %v1624
      %v1628 = vmul.f32 %v1476, %v1624
      %1632 = vrot.lane.b32.xlu0 %v1626, 107
      %v1633 = vpop.permute.xlu0 %1632
      %1634 = vrot.lane.b32.xlu0 %v1627, 107
      %v1635 = vpop.permute.xlu0 %1634
      %1636 = vrot.lane.b32.xlu0 %v1628, 107
      %v1637 = vpop.permute.xlu0 %1636
      %vm1638 = vcmask 875520
      %v1639 = vsel %vm1638, %v1633, %v1635
      %v1640 = vsel %vm1638, %v1635, %v1637
      %v1643 = vadd.f32 %v1620, %v1639
      %v1644 = vadd.f32 %v1621, %v1640
      %1645 = vset.pattern.permute.xlu0 11
      %1646 = vperm.xlu0 %1645, %v675
      %v1647 = vpop.permute.xlu0 %1646
      %v1649 = vmul.f32 %v1474, %v1647
      %v1650 = vmul.f32 %v1475, %v1647
      %v1651 = vmul.f32 %v1476, %v1647
      %1655 = vrot.lane.b32.xlu0 %v1649, 106
      %v1656 = vpop.permute.xlu0 %1655
      %1657 = vrot.lane.b32.xlu0 %v1650, 106
      %v1658 = vpop.permute.xlu0 %1657
      %1659 = vrot.lane.b32.xlu0 %v1651, 106
      %v1660 = vpop.permute.xlu0 %1659
      %vm1661 = vcmask 867328
      %v1662 = vsel %vm1661, %v1656, %v1658
      %v1663 = vsel %vm1661, %v1658, %v1660
      %v1666 = vadd.f32 %v1643, %v1662
      %v1667 = vadd.f32 %v1644, %v1663
      %1668 = vset.pattern.permute.xlu0 14
      %1669 = vperm.xlu0 %1668, %v675
      %v1670 = vpop.permute.xlu0 %1669
      %v1672 = vmul.f32 %v1474, %v1670
      %v1673 = vmul.f32 %v1475, %v1670
      %v1674 = vmul.f32 %v1476, %v1670
      %1678 = vrot.lane.b32.xlu0 %v1672, 92
      %v1679 = vpop.permute.xlu0 %1678
      %1680 = vrot.lane.b32.xlu0 %v1673, 92
      %v1681 = vpop.permute.xlu0 %1680
      %1682 = vrot.lane.b32.xlu0 %v1674, 92
      %v1683 = vpop.permute.xlu0 %1682
      %v1684 = vsel %vm1204, %v1679, %v1681
      %v1685 = vsel %vm1204, %v1681, %v1683
      %v1688 = vadd.f32 %v1666, %v1684
      %v1689 = vadd.f32 %v1667, %v1685
      %1690 = vset.pattern.permute.xlu0 15
      %1691 = vperm.xlu0 %1690, %v675
      %v1692 = vpop.permute.xlu0 %1691
      %v1694 = vmul.f32 %v1474, %v1692
      %v1695 = vmul.f32 %v1475, %v1692
      %v1696 = vmul.f32 %v1476, %v1692
      %1700 = vrot.lane.b32.xlu0 %v1694, 91
      %v1701 = vpop.permute.xlu0 %1700
      %1702 = vrot.lane.b32.xlu0 %v1695, 91
      %v1703 = vpop.permute.xlu0 %1702
      %1704 = vrot.lane.b32.xlu0 %v1696, 91
      %v1705 = vpop.permute.xlu0 %1704
      %v1706 = vsel %vm1292, %v1701, %v1703
      %v1707 = vsel %vm1292, %v1703, %v1705
      %v1710 = vadd.f32 %v1688, %v1706
      %v1711 = vadd.f32 %v1689, %v1707
      %1712 = vset.pattern.permute.xlu0 16
      %1713 = vperm.xlu0 %1712, %v675
      %v1714 = vpop.permute.xlu0 %1713
      %v1716 = vmul.f32 %v1474, %v1714
      %v1717 = vmul.f32 %v1475, %v1714
      %v1718 = vmul.f32 %v1476, %v1714
      %1722 = vrot.lane.b32.xlu0 %v1716, 90
      %v1723 = vpop.permute.xlu0 %1722
      %1724 = vrot.lane.b32.xlu0 %v1717, 90
      %v1725 = vpop.permute.xlu0 %1724
      %1726 = vrot.lane.b32.xlu0 %v1718, 90
      %v1727 = vpop.permute.xlu0 %1726
      %v1728 = vsel %vm1380, %v1723, %v1725
      %v1729 = vsel %vm1380, %v1725, %v1727
      %v1732 = vadd.f32 %v1710, %v1728
      %v1733 = vadd.f32 %v1711, %v1729
      %1734 = vset.pattern.permute.xlu0 17
      %1735 = vperm.xlu0 %1734, %v675
      %v1736 = vpop.permute.xlu0 %1735
      %v1738 = vmul.f32 %v1474, %v1736
      %v1739 = vmul.f32 %v1475, %v1736
      %v1740 = vmul.f32 %v1476, %v1736
      %1744 = vrot.lane.b32.xlu0 %v1738, 89
      %v1745 = vpop.permute.xlu0 %1744
      %1746 = vrot.lane.b32.xlu0 %v1739, 89
      %v1747 = vpop.permute.xlu0 %1746
      %1748 = vrot.lane.b32.xlu0 %v1740, 89
      %v1749 = vpop.permute.xlu0 %1748
      %vm1750 = vcmask 728064
      %v1751 = vsel %vm1750, %v1745, %v1747
      %v1752 = vsel %vm1750, %v1747, %v1749
      %v1755 = vadd.f32 %v1732, %v1751
      %v1756 = vadd.f32 %v1733, %v1752
      %1757 = vset.pattern.permute.xlu0 18
      %1758 = vperm.xlu0 %1757, %v675
      %v1759 = vpop.permute.xlu0 %1758
      %v1761 = vmul.f32 %v1474, %v1759
      %v1762 = vmul.f32 %v1475, %v1759
      %v1763 = vmul.f32 %v1476, %v1759
      %1767 = vrot.lane.b32.xlu0 %v1761, 88
      %v1768 = vpop.permute.xlu0 %1767
      %1769 = vrot.lane.b32.xlu0 %v1762, 88
      %v1770 = vpop.permute.xlu0 %1769
      %1771 = vrot.lane.b32.xlu0 %v1763, 88
      %v1772 = vpop.permute.xlu0 %1771
      %vm1773 = vcmask 719872
      %v1774 = vsel %vm1773, %v1768, %v1770
      %v1775 = vsel %vm1773, %v1770, %v1772
      %v1778 = vadd.f32 %v1755, %v1774
      %v1779 = vadd.f32 %v1756, %v1775
      %1780 = vset.pattern.permute.xlu0 21
      %1781 = vperm.xlu0 %1780, %v675
      %v1782 = vpop.permute.xlu0 %1781
      %v1784 = vmul.f32 %v1474, %v1782
      %v1785 = vmul.f32 %v1475, %v1782
      %v1786 = vmul.f32 %v1476, %v1782
      %1790 = vrot.lane.b32.xlu0 %v1784, 74
      %v1791 = vpop.permute.xlu0 %1790
      %1792 = vrot.lane.b32.xlu0 %v1785, 74
      %v1793 = vpop.permute.xlu0 %1792
      %1794 = vrot.lane.b32.xlu0 %v1786, 74
      %v1795 = vpop.permute.xlu0 %1794
      %vm1796 = vcmask 605184
      %v1797 = vsel %vm1796, %v1791, %v1793
      %v1798 = vsel %vm1796, %v1793, %v1795
      %v1801 = vadd.f32 %v1778, %v1797
      %v1802 = vadd.f32 %v1779, %v1798
      %1803 = vset.pattern.permute.xlu0 22
      %1804 = vperm.xlu0 %1803, %v675
      %v1805 = vpop.permute.xlu0 %1804
      %v1807 = vmul.f32 %v1474, %v1805
      %v1808 = vmul.f32 %v1475, %v1805
      %v1809 = vmul.f32 %v1476, %v1805
      %1813 = vrot.lane.b32.xlu0 %v1807, 73
      %v1814 = vpop.permute.xlu0 %1813
      %1815 = vrot.lane.b32.xlu0 %v1808, 73
      %v1816 = vpop.permute.xlu0 %1815
      %1817 = vrot.lane.b32.xlu0 %v1809, 73
      %v1818 = vpop.permute.xlu0 %1817
      %vm1819 = vcmask 596992
      %v1820 = vsel %vm1819, %v1814, %v1816
      %v1821 = vsel %vm1819, %v1816, %v1818
      %v1824 = vadd.f32 %v1801, %v1820
      %v1825 = vadd.f32 %v1802, %v1821
      %1826 = vset.pattern.permute.xlu0 23
      %1827 = vperm.xlu0 %1826, %v675
      %v1828 = vpop.permute.xlu0 %1827
      %v1830 = vmul.f32 %v1474, %v1828
      %v1831 = vmul.f32 %v1475, %v1828
      %v1832 = vmul.f32 %v1476, %v1828
      %1836 = vrot.lane.b32.xlu0 %v1830, 72
      %v1837 = vpop.permute.xlu0 %1836
      %1838 = vrot.lane.b32.xlu0 %v1831, 72
      %v1839 = vpop.permute.xlu0 %1838
      %1840 = vrot.lane.b32.xlu0 %v1832, 72
      %v1841 = vpop.permute.xlu0 %1840
      %vm1842 = vcmask 588800
      %v1843 = vsel %vm1842, %v1837, %v1839
      %v1844 = vsel %vm1842, %v1839, %v1841
      %v1847 = vadd.f32 %v1824, %v1843
      %v1848 = vadd.f32 %v1825, %v1844
      %1849 = vset.pattern.permute.xlu0 24
      %1850 = vperm.xlu0 %1849, %v675
      %v1851 = vpop.permute.xlu0 %1850
      %v1853 = vmul.f32 %v1474, %v1851
      %v1854 = vmul.f32 %v1475, %v1851
      %v1855 = vmul.f32 %v1476, %v1851
      %1859 = vrot.lane.b32.xlu0 %v1853, 71
      %v1860 = vpop.permute.xlu0 %1859
      %1861 = vrot.lane.b32.xlu0 %v1854, 71
      %v1862 = vpop.permute.xlu0 %1861
      %1863 = vrot.lane.b32.xlu0 %v1855, 71
      %v1864 = vpop.permute.xlu0 %1863
      %vm1865 = vcmask 580608
      %v1866 = vsel %vm1865, %v1860, %v1862
      %v1867 = vsel %vm1865, %v1862, %v1864
      %v1870 = vadd.f32 %v1847, %v1866
      %v1871 = vadd.f32 %v1848, %v1867
      %1872 = vset.pattern.permute.xlu0 25
      %1873 = vperm.xlu0 %1872, %v675
      %v1874 = vpop.permute.xlu0 %1873
      %v1876 = vmul.f32 %v1474, %v1874
      %v1877 = vmul.f32 %v1475, %v1874
      %v1878 = vmul.f32 %v1476, %v1874
      %1882 = vrot.lane.b32.xlu0 %v1876, 70
      %v1883 = vpop.permute.xlu0 %1882
      %1884 = vrot.lane.b32.xlu0 %v1877, 70
      %v1885 = vpop.permute.xlu0 %1884
      %1886 = vrot.lane.b32.xlu0 %v1878, 70
      %v1887 = vpop.permute.xlu0 %1886
      %vm1888 = vcmask 572416
      %v1889 = vsel %vm1888, %v1883, %v1885
      %v1890 = vsel %vm1888, %v1885, %v1887
      %v1893 = vadd.f32 %v1870, %v1889
      %v1894 = vadd.f32 %v1871, %v1890
      %1895 = vset.pattern.permute.xlu0 28
      %1896 = vperm.xlu0 %1895, %v675
      %v1897 = vpop.permute.xlu0 %1896
      %v1899 = vmul.f32 %v1474, %v1897
      %v1900 = vmul.f32 %v1475, %v1897
      %v1901 = vmul.f32 %v1476, %v1897
      %1905 = vrot.lane.b32.xlu0 %v1899, 56
      %v1906 = vpop.permute.xlu0 %1905
      %1907 = vrot.lane.b32.xlu0 %v1900, 56
      %v1908 = vpop.permute.xlu0 %1907
      %1909 = vrot.lane.b32.xlu0 %v1901, 56
      %v1910 = vpop.permute.xlu0 %1909
      %vm1911 = vcmask 457728
      %v1912 = vsel %vm1911, %v1906, %v1908
      %v1913 = vsel %vm1911, %v1908, %v1910
      %v1916 = vadd.f32 %v1893, %v1912
      %v1917 = vadd.f32 %v1894, %v1913
      %1918 = vset.pattern.permute.xlu0 29
      %1919 = vperm.xlu0 %1918, %v675
      %v1920 = vpop.permute.xlu0 %1919
      %v1922 = vmul.f32 %v1474, %v1920
      %v1923 = vmul.f32 %v1475, %v1920
      %v1924 = vmul.f32 %v1476, %v1920
      %1928 = vrot.lane.b32.xlu0 %v1922, 55
      %v1929 = vpop.permute.xlu0 %1928
      %1930 = vrot.lane.b32.xlu0 %v1923, 55
      %v1931 = vpop.permute.xlu0 %1930
      %1932 = vrot.lane.b32.xlu0 %v1924, 55
      %v1933 = vpop.permute.xlu0 %1932
      %vm1934 = vcmask 449536
      %v1935 = vsel %vm1934, %v1929, %v1931
      %v1936 = vsel %vm1934, %v1931, %v1933
      %v1939 = vadd.f32 %v1916, %v1935
      %v1940 = vadd.f32 %v1917, %v1936
      %1941 = vset.pattern.permute.xlu0 30
      %1942 = vperm.xlu0 %1941, %v675
      %v1943 = vpop.permute.xlu0 %1942
      %v1945 = vmul.f32 %v1474, %v1943
      %v1946 = vmul.f32 %v1475, %v1943
      %v1947 = vmul.f32 %v1476, %v1943
      %1951 = vrot.lane.b32.xlu0 %v1945, 54
      %v1952 = vpop.permute.xlu0 %1951
      %1953 = vrot.lane.b32.xlu0 %v1946, 54
      %v1954 = vpop.permute.xlu0 %1953
      %1955 = vrot.lane.b32.xlu0 %v1947, 54
      %v1956 = vpop.permute.xlu0 %1955
      %vm1957 = vcmask 441344
      %v1958 = vsel %vm1957, %v1952, %v1954
      %v1959 = vsel %vm1957, %v1954, %v1956
      %v1962 = vadd.f32 %v1939, %v1958
      %v1963 = vadd.f32 %v1940, %v1959
      %1964 = vset.pattern.permute.xlu0 31
      %1965 = vperm.xlu0 %1964, %v675
      %v1966 = vpop.permute.xlu0 %1965
      %v1968 = vmul.f32 %v1474, %v1966
      %v1969 = vmul.f32 %v1475, %v1966
      %v1970 = vmul.f32 %v1476, %v1966
      %1974 = vrot.lane.b32.xlu0 %v1968, 53
      %v1975 = vpop.permute.xlu0 %1974
      %1976 = vrot.lane.b32.xlu0 %v1969, 53
      %v1977 = vpop.permute.xlu0 %1976
      %1978 = vrot.lane.b32.xlu0 %v1970, 53
      %v1979 = vpop.permute.xlu0 %1978
      %vm1980 = vcmask 433152
      %v1981 = vsel %vm1980, %v1975, %v1977
      %v1982 = vsel %vm1980, %v1977, %v1979
      %v1985 = vadd.f32 %v1962, %v1981
      %v1986 = vadd.f32 %v1963, %v1982
      %1987 = vset.pattern.permute.xlu0 32
      %1988 = vperm.xlu0 %1987, %v675
      %v1989 = vpop.permute.xlu0 %1988
      %v1991 = vmul.f32 %v1474, %v1989
      %v1992 = vmul.f32 %v1475, %v1989
      %v1993 = vmul.f32 %v1476, %v1989
      %1997 = vrot.lane.b32.xlu0 %v1991, 52
      %v1998 = vpop.permute.xlu0 %1997
      %1999 = vrot.lane.b32.xlu0 %v1992, 52
      %v2000 = vpop.permute.xlu0 %1999
      %2001 = vrot.lane.b32.xlu0 %v1993, 52
      %v2002 = vpop.permute.xlu0 %2001
      %vm2003 = vcmask 424960
      %v2004 = vsel %vm2003, %v1998, %v2000
      %v2005 = vsel %vm2003, %v2000, %v2002
      %v2008 = vadd.f32 %v1985, %v2004
      %v2009 = vadd.f32 %v1986, %v2005
      %v2010 = vld [vmem:[%s7] sm:$0xff]
      %v2011 = vld [vmem:[%s8] sm:$0xff]
      %2013 = vset.pattern.permute.xlu0 0
      %2014 = vperm.xlu0 %2013, %v2011
      %v2015 = vpop.permute.xlu0 %2014
      %vm2017 = vcmask 64512
      %v2019 = vsel %vm2017, %v2010, 0
      %2021 = vmatpush.msra.mxu0 0.0
      %2022 = vmatpush.msra.mxu0 0.0
      %2023 = vmatpush.msra.mxu0 0.0
      %2024 = vmatpush.msra.mxu0 0.0
      %2025 = vmatpush.msra.mxu0 0.0
      %2026 = vmatpush.msra.mxu0 0.0
      %2027 = vmatpush.msra.mxu0 0.0
      %2028 = vmatpush.msra.mxu0 0.0
      %2029 = vmatpush.msra.mxu0 0.0
      %2030 = vmatpush.msra.mxu0 0.0
      %2031 = vmatpush.msra.mxu0 0.0
      %2032 = vmatpush.msra.mxu0 0.0
      %2033 = vmatpush.msra.mxu0 0.0
      %2034 = vmatpush.msra.mxu0 0.0
      %2035 = vmatpush.msra.mxu0 0.0
      %2036 = vmatpush.msra.mxu0 %v2008
      %2037 = vmatmul.f32.gmra.mxu0 %v2019
      %v2038 = vpop.f32.mrf.mxu0
      %v2039 = vadd.f32 %v2015, %v2038
      %2040 = vdwg.mxu0
      %2041 = vmatpush.msra.mxu0 0.0
      %2042 = vmatpush.msra.mxu0 0.0
      %2043 = vmatpush.msra.mxu0 0.0
      %2044 = vmatpush.msra.mxu0 0.0
      %2045 = vmatpush.msra.mxu0 0.0
      %2046 = vmatpush.msra.mxu0 0.0
      %2047 = vmatpush.msra.mxu0 0.0
      %2048 = vmatpush.msra.mxu0 0.0
      %2049 = vmatpush.msra.mxu0 0.0
      %2050 = vmatpush.msra.mxu0 0.0
      %2051 = vmatpush.msra.mxu0 0.0
      %2052 = vmatpush.msra.mxu0 0.0
      %2053 = vmatpush.msra.mxu0 0.0
      %2054 = vmatpush.msra.mxu0 0.0
      %2055 = vmatpush.msra.mxu0 0.0
      %2056 = vmatpush.msra.mxu0 %v2009
      %2057 = vmatmul.f32.gmra.mxu0 %v2019
      %v2058 = vpop.f32.mrf.mxu0
      %v2059 = vadd.f32 %v2015, %v2058
      %2060 = vdwg.mxu0
      %v2061 = vmax.f32 %v2039, 0.0
      %v2062 = vmax.f32 %v2059, 0.0
      %v2063 = vld [vmem:[%s9] sm:$0xf]
      %v2064 = vld [vmem:[%s10] sm:$0xf]
      %2066 = vset.pattern.permute.xlu0 0
      %2067 = vperm.xlu0 %2066, %v2064
      %v2068 = vpop.permute.xlu0 %2067
      %v2071 = vsel %vm2017, %v2063, 0
      %2073 = vmatpush.msra.mxu0 0.0
      %2074 = vmatpush.msra.mxu0 0.0
      %2075 = vmatpush.msra.mxu0 0.0
      %2076 = vmatpush.msra.mxu0 0.0
      %2077 = vmatpush.msra.mxu0 0.0
      %2078 = vmatpush.msra.mxu0 0.0
      %2079 = vmatpush.msra.mxu0 0.0
      %2080 = vmatpush.msra.mxu0 0.0
      %2081 = vmatpush.msra.mxu0 0.0
      %2082 = vmatpush.msra.mxu0 0.0
      %2083 = vmatpush.msra.mxu0 0.0
      %2084 = vmatpush.msra.mxu0 0.0
      %2085 = vmatpush.msra.mxu0 0.0
      %2086 = vmatpush.msra.mxu0 0.0
      %2087 = vmatpush.msra.mxu0 0.0
      %2088 = vmatpush.msra.mxu0 %v2061
      %2089 = vmatmul.f32.gmra.mxu0 %v2071
      %v2090 = vpop.f32.mrf.mxu0
      %v2091 = vadd.f32 %v2068, %v2090
      %2092 = vdwg.mxu0
      %2093 = vmatpush.msra.mxu0 0.0
      %2094 = vmatpush.msra.mxu0 0.0
      %2095 = vmatpush.msra.mxu0 0.0
      %2096 = vmatpush.msra.mxu0 0.0
      %2097 = vmatpush.msra.mxu0 0.0
      %2098 = vmatpush.msra.mxu0 0.0
      %2099 = vmatpush.msra.mxu0 0.0
      %2100 = vmatpush.msra.mxu0 0.0
      %2101 = vmatpush.msra.mxu0 0.0
      %2102 = vmatpush.msra.mxu0 0.0
      %2103 = vmatpush.msra.mxu0 0.0
      %2104 = vmatpush.msra.mxu0 0.0
      %2105 = vmatpush.msra.mxu0 0.0
      %2106 = vmatpush.msra.mxu0 0.0
      %2107 = vmatpush.msra.mxu0 0.0
      %2108 = vmatpush.msra.mxu0 %v2062
      %2109 = vmatmul.f32.gmra.mxu0 %v2071
      %v2110 = vpop.f32.mrf.mxu0
      %v2111 = vadd.f32 %v2068, %v2110
      %2112 = vdwg.mxu0
      %v2115 = vrot.slane %v2111, 4
      %v2116 = vsel %vm418, %v2091, %v2115
      %vm2118 = vcmask 982020
      %vm2119 = vmor %vm2118, %vm418
      %2120 = vst.msk [vmem:[%s403] sm:$0xff] %vm2119, %v2116
      %p2121 = scmp.lt.s32.totalorder %s22, 1
      %s2122 = scalar_select %p2121, %s22, 1
      %s2123 = smul.addr %s2122, 2
      %s2124 = smul.addr %s2123, 4
      %s2125 = scalar_lea.vmem %s11, %s2124
      // Predicated region
      $region65: #{depth_corr_forward.1} parent=63 // pred_check
        %p2126 = pneg %p281
      $region66: #{depth_corr_forward.1} parent=63 // pred_check_branch
        %2128 = sbr.rel (%p2126) target = $region68
      $region67: #{depth_corr_forward.1} parent=63 // pred_region
        _
      $region68: #{depth_corr_forward.1} parent=63 // pred_fallthru
        _
    $region64: #{depth_corr_forward.1} parent=5 // pred_fallthru
      _
    %p2129 = scmp.le.s32.totalorder 2, %s17
    // Predicated region
    $region69: #{depth_corr_forward.1} parent=5 // pred_check
      %p2130 = pneg %p2129
    $region70: #{depth_corr_forward.1} parent=5 // pred_check_branch
      %2132 = sbr.rel (%p2130) target = $region72
    $region71: #{depth_corr_forward.1} parent=5 // pred_region
      %s2133 = ssub.s32 %s17, 2
      // Predicated region
      $region73: #{depth_corr_forward.1} parent=71 // pred_check
        %p2134 = pneg %p287
      $region74: #{depth_corr_forward.1} parent=71 // pred_check_branch
        %2136 = sbr.rel (%p2134) target = $region76
      $region75: #{depth_corr_forward.1} parent=71 // pred_region
        %p2137 = scmp.lt.s32.totalorder %s23, 1
        %s2138 = scalar_select %p2137, %s23, 1
        %s2139 = smul.addr %s2138, 2
        %s2140 = smul.addr %s2139, 4
        %s2141 = scalar_lea.vmem %s11, %s2140
      $region76: #{depth_corr_forward.1} parent=71 // pred_fallthru
        _
    $region72: #{depth_corr_forward.1} parent=5 // pred_fallthru
      _
  $region6: #{depth_corr_forward.1} parent=0 // loop_footer
    %s21 = sadd.s32 1, %s17
  $region7: #{depth_corr_forward.1} parent=0 // loop_footer_branch
    %16 = sbr.rel target = $region3
  $region8: #{depth_corr_forward.1} parent=0 // loop_exit
    _

</llo_original>
